<compile_context>
chip_gen: v5e
topology: v5e:2x2
jax: 0.10.0
libtpu: 0.0.40
codegen_flags: <defaults>
</compile_context>

<pallas_src>
import functools
import math

import jax
import jax.numpy as jnp
from jax import lax
from jax.experimental import pallas as pl
from jax.experimental.pallas import tpu as pltpu

LN_EPS = 1e-5
COMPUTE_DTYPE = jnp.bfloat16          # matmul-operand dtype (accumulation stays f32)
VMEM_LIMIT = 64 * 1024 * 1024         # fits every TPU generation's physical VMEM


def _layer_norm(x, g, b):
    mu = jnp.mean(x, axis=-1, keepdims=True)
    var = jnp.mean((x - mu) ** 2, axis=-1, keepdims=True)
    return (x - mu) * lax.rsqrt(var + LN_EPS) * g + b


def _gelu_new(x):
    # HF GPT-2 "gelu_new" (tanh approximation), computed in f32
    return 0.5 * x * (1.0 + jnp.tanh(0.7978845608028654 * (x + 0.044715 * x * x * x)))


# ----------------------------- Pallas kernels ------------------------------ #

def gpt2_block_kernel(x_ref, ln1g_ref, ln1b_ref, wqkv_ref, bqkv_ref,
                      wo_ref, bo_ref, ln2g_ref, ln2b_ref,
                      wfc_ref, bfc_ref, wpr_ref, bpr_ref, o_ref, *, n_head):
    """One pre-LN GPT-2 transformer block for a single batch element."""
    x = x_ref[0]                              # (S, H) f32
    S, H = x.shape
    dh = H // n_head
    cdt = COMPUTE_DTYPE

    # --- self-attention ---
    h1 = _layer_norm(x, ln1g_ref[...], ln1b_ref[...])
    # one wide MXU matmul for all of q,k,v; 1/sqrt(dh) is pre-folded into the Q columns
    qkv = jnp.dot(h1.astype(cdt), wqkv_ref[...],
                  preferred_element_type=jnp.float32) + bqkv_ref[...]    # (S, 3H) f32

    # head-major (n_head, S, dh) tensors (stack along a *major* axis, lane layout unchanged)
    q = jnp.stack([qkv[:, h * dh:(h + 1) * dh] for h in range(n_head)], axis=0)
    k = jnp.stack([qkv[:, H + h * dh:H + (h + 1) * dh] for h in range(n_head)], axis=0)
    v = jnp.stack([qkv[:, 2 * H + h * dh:2 * H + (h + 1) * dh] for h in range(n_head)], axis=0)
    q = q.astype(cdt)
    k = k.astype(cdt)
    v = v.astype(cdt)

    # batched QK^T for all heads at once (leading batch dim, no in-kernel transpose)
    s = jnp.einsum('hqd,hkd->hqk', q, k, preferred_element_type=jnp.float32)
    row = lax.broadcasted_iota(jnp.int32, (n_head, S, S), 1)
    col = lax.broadcasted_iota(jnp.int32, (n_head, S, S), 2)
    s = jnp.where(row >= col, s, -1e30)                                  # mask in f32
    s = s - jnp.max(s, axis=-1, keepdims=True)
    p = jnp.exp(s)
    p = p * pl.reciprocal(jnp.sum(p, axis=-1, keepdims=True), approx=True)

    ctx = jnp.einsum('hqk,hkd->hqd', p.astype(cdt), v,
                     preferred_element_type=jnp.float32)                 # (n_head, S, dh)

    # output projection: w_o stored head-major as (n_head, dh, H); per-head matmul + sum
    attn = jnp.einsum('hsd,hdk->hsk', ctx.astype(cdt), wo_ref[...],
                      preferred_element_type=jnp.float32)                # (n_head, S, H)
    x = x + jnp.sum(attn, axis=0) + bo_ref[...]

    # --- MLP ---
    h2 = _layer_norm(x, ln2g_ref[...], ln2b_ref[...])
    f = jnp.dot(h2.astype(cdt), wfc_ref[...],
                preferred_element_type=jnp.float32) + bfc_ref[...]
    f = _gelu_new(f)
    f = jnp.dot(f.astype(cdt), wpr_ref[...],
                preferred_element_type=jnp.float32) + bpr_ref[...]
    o_ref[0] = x + f


def lm_head_kernel(x_ref, lnfg_ref, lnfb_ref, wte_t_ref, o_ref):
    """Final LN + tied LM head for one batch element and one vocab tile.

    wte is pre-transposed to (H, V) in the wrapper, so the matmul is lane-dense
    with no in-kernel transpose; the LN recompute per vocab tile is negligible.
    """
    x = _layer_norm(x_ref[0], lnfg_ref[...], lnfb_ref[...])              # (T, H) f32
    o_ref[0] = jnp.dot(x.astype(wte_t_ref.dtype), wte_t_ref[...],
                       preferred_element_type=jnp.float32)               # (T, TV) f32


# ------------------------------ JAX wrappers -------------------------------- #

def _const_spec(shape):
    nd = len(shape)
    return pl.BlockSpec(shape, lambda *_, _nd=nd: (0,) * _nd)


def run_block(x, blk, n_head):
    B, S, H = x.shape
    weights = [
        blk["ln1_g"], blk["ln1_b"],
        blk["w_qkv"], blk["b_qkv"],
        blk["w_o_hm"], blk["b_o"],
        blk["ln2_g"], blk["ln2_b"],
        blk["w_fc"], blk["b_fc"],
        blk["w_proj"], blk["b_proj"],
    ]
    in_specs = [pl.BlockSpec((1, S, H), lambda b: (b, 0, 0))]
    in_specs += [_const_spec(w.shape) for w in weights]
    return pl.pallas_call(
        functools.partial(gpt2_block_kernel, n_head=n_head),
        out_shape=jax.ShapeDtypeStruct((B, S, H), jnp.float32),
        grid=(B,),
        in_specs=in_specs,
        out_specs=pl.BlockSpec((1, S, H), lambda b: (b, 0, 0)),
        compiler_params=pltpu.CompilerParams(
            dimension_semantics=("parallel",),
            vmem_limit_bytes=VMEM_LIMIT),
    )(x, *weights)


def _vocab_tile(V):
    # real vocabs (multiple of 128): stream 128..2048-wide tiles; toy vocabs: full dim
    if V % 128 != 0:
        return V
    for tv in (2048, 1024, 512, 256, 128):
        if V % tv == 0:
            return tv
    return V


def run_lm_head(x, lnf_g, lnf_b, wte_t):
    B, T, H = x.shape
    V = wte_t.shape[1]
    TV = _vocab_tile(V)
    nV = V // TV
    return pl.pallas_call(
        lm_head_kernel,
        out_shape=jax.ShapeDtypeStruct((B, T, V), jnp.float32),
        grid=(B, nV),
        in_specs=[
            pl.BlockSpec((1, T, H), lambda b, v: (b, 0, 0)),
            pl.BlockSpec(lnf_g.shape, lambda b, v: (0, 0)),
            pl.BlockSpec(lnf_b.shape, lambda b, v: (0, 0)),
            pl.BlockSpec((H, TV), lambda b, v: (0, v)),
        ],
        out_specs=pl.BlockSpec((1, T, TV), lambda b, v: (b, 0, v)),
        compiler_params=pltpu.CompilerParams(
            dimension_semantics=("parallel", "parallel"),
            vmem_limit_bytes=VMEM_LIMIT),
    )(x, lnf_g, lnf_b, wte_t)


def prepare_params(params, n_head):
    """Layout / dtype prep done once in plain XLA (outside the kernels)."""
    H = params["wte"].shape[1]
    dh = H // n_head
    scale = 1.0 / math.sqrt(dh)
    # fold 1/sqrt(dh) into the Q projection columns of w_qkv / b_qkv
    qscale = jnp.concatenate(
        [jnp.full((1, H), scale, jnp.float32), jnp.ones((1, 2 * H), jnp.float32)], axis=1)

    prepped = {
        "wte": params["wte"],                                 # f32, used for embedding gather
        "wpe": params["wpe"],
        "lnf_g": params["lnf_g"],
        "lnf_b": params["lnf_b"],
        "wte_t": params["wte"].T.astype(COMPUTE_DTYPE),       # (H, V), tied LM head
        "blocks": [],
    }
    for blk in params["blocks"]:
        prepped["blocks"].append({
            "ln1_g": blk["ln1_g"], "ln1_b": blk["ln1_b"],
            "w_qkv": (blk["w_qkv"] * qscale).astype(COMPUTE_DTYPE),
            "b_qkv": blk["b_qkv"] * qscale,
            "w_o_hm": blk["w_o"].reshape(n_head, dh, H).astype(COMPUTE_DTYPE),
            "b_o": blk["b_o"],
            "ln2_g": blk["ln2_g"], "ln2_b": blk["ln2_b"],
            "w_fc": blk["w_fc"].astype(COMPUTE_DTYPE),
            "b_fc": blk["b_fc"],
            "w_proj": blk["w_proj"].astype(COMPUTE_DTYPE),
            "b_proj": blk["b_proj"],
        })
    return prepped


def gpt2_hidden_states(input_ids, prepped, n_head):
    B, S = input_ids.shape
    hidden = prepped["wte"][input_ids] + prepped["wpe"][jnp.arange(S)][None, :, :]
    hidden = hidden.astype(jnp.float32)
    for blk in prepped["blocks"]:
        hidden = run_block(hidden, blk, n_head)
    return hidden


def gpt2_decoder_forward(seq, target, params, n_head):
    """Mirrors GPT2.decoder_forward (teacher-forcing branch)."""
    prepped = prepare_params(params, n_head)
    inputs = jnp.concatenate([seq, target[:, :-1]], axis=1)
    hidden = gpt2_hidden_states(inputs, prepped, n_head)
    # slice to target positions BEFORE the FLOP-dominant LM head (same result as
    # slicing the logits afterwards, since LN + head are per-position)
    hidden = hidden[:, -target.shape[1]:, :]
    logits = run_lm_head(hidden, prepped["lnf_g"], prepped["lnf_b"], prepped["wte_t"])
    outputs = jnp.argmax(logits, axis=-1)                     # torch.topk(logits, 1)[1]
    return logits, outputs


# ------------------------------ param init ---------------------------------- #

def init_params(key, vocab, max_pos, hidden, n_layer):
    keys = jax.random.split(key, 4 + 6 * n_layer)
    ki = iter(range(len(keys)))
    std = 0.02
    ffn = 4 * hidden
    params = {
        "wte": std * jax.random.normal(keys[next(ki)], (vocab, hidden), jnp.float32),
        "wpe": std * jax.random.normal(keys[next(ki)], (max_pos, hidden), jnp.float32),
        "lnf_g": jnp.ones((1, hidden), jnp.float32),
        "lnf_b": jnp.zeros((1, hidden), jnp.float32),
        "blocks": [],
    }
    for _ in range(n_layer):
        blk = {
            "ln1_g": jnp.ones((1, hidden), jnp.float32),
            "ln1_b": jnp.zeros((1, hidden), jnp.float32),
            "w_qkv": std * jax.random.normal(keys[next(ki)], (hidden, 3 * hidden), jnp.float32),
            "b_qkv": jnp.zeros((1, 3 * hidden), jnp.float32),
            "w_o": std * jax.random.normal(keys[next(ki)], (hidden, hidden), jnp.float32),
            "b_o": jnp.zeros((1, hidden), jnp.float32),
            "ln2_g": jnp.ones((1, hidden), jnp.float32),
            "ln2_b": jnp.zeros((1, hidden), jnp.float32),
            "w_fc": std * jax.random.normal(keys[next(ki)], (hidden, ffn), jnp.float32),
            "b_fc": jnp.zeros((1, ffn), jnp.float32),
            "w_proj": std * jax.random.normal(keys[next(ki)], (ffn, hidden), jnp.float32),
            "b_proj": jnp.zeros((1, hidden), jnp.float32),
        }
        params["blocks"].append(blk)
    return params


# --------------------------------- main -------------------------------------- #

if __name__ == "__main__":
    VOCAB = 64
    HIDDEN = 32
    N_HEAD = 2
    N_LAYER = 2
    MAX_POS = 64
    BATCH = 2
    SEQ_LEN = 8
    TGT_LEN = 9   # inputs = 8 + (9 - 1) = 16 tokens

    root = jax.random.PRNGKey(0)
    k_params, k_seq, k_tgt = jax.random.split(root, 3)
    params = init_params(k_params, VOCAB, MAX_POS, HIDDEN, N_LAYER)

    seq = jax.random.randint(k_seq, (BATCH, SEQ_LEN), 0, VOCAB, dtype=jnp.int32)
    target = jax.random.randint(k_tgt, (BATCH, TGT_LEN), 0, VOCAB, dtype=jnp.int32)

    logits, outputs = jax.jit(
        functools.partial(gpt2_decoder_forward, params=params, n_head=N_HEAD)
    )(seq, target)
    jax.block_until_ready((logits, outputs))

    assert logits.shape == (BATCH, TGT_LEN, VOCAB), logits.shape
    assert outputs.shape == (BATCH, TGT_LEN), outputs.shape
    assert jnp.isfinite(logits).all()
    print("KERNEL_OK")
</pallas_src>

<mosaic_0001>
module attributes {stable_mosaic.version = 11 : i64} {
  func.func @lm_head_kernel(%arg0: i32, %arg1: i32, %arg2: memref<1x9x32xf32, #tpu.memory_space<vmem>>, %arg3: memref<1x32xf32, #tpu.memory_space<vmem>>, %arg4: memref<1x32xf32, #tpu.memory_space<vmem>>, %arg5: memref<32x64xbf16, #tpu.memory_space<vmem>>, %arg6: memref<1x9x64xf32, #tpu.memory_space<vmem>>) attributes {dimension_semantics = [#tpu.dimension_semantics<parallel>, #tpu.dimension_semantics<parallel>], iteration_bounds = array<i64: 2, 1>, scalar_prefetch = 0 : i64, scratch_operands = 0 : i64, tpu.core_type = #tpu.core_type<tc>, window_params = [{transform_indices = @transform_0, window_bounds = array<i64: 1, 9, 32>}, {pipeline_mode = #tpu.pipeline_mode<synchronous>, transform_indices = @transform_1, window_bounds = array<i64: 1, 32>}, {pipeline_mode = #tpu.pipeline_mode<synchronous>, transform_indices = @transform_2, window_bounds = array<i64: 1, 32>}, {transform_indices = @transform_3, window_bounds = array<i64: 32, 64>}, {transform_indices = @transform_4, window_bounds = array<i64: 1, 9, 64>}]} {
    %c0 = arith.constant 0 : index
    %c0_0 = arith.constant 0 : index
    %c0_1 = arith.constant 0 : index
    %0 = vector.load %arg2[%c0, %c0_0, %c0_1] : memref<1x9x32xf32, #tpu.memory_space<vmem>>, vector<1x9x32xf32>
    %1 = vector.shape_cast %0 : vector<1x9x32xf32> to vector<9x32xf32>
    %c0_2 = arith.constant 0 : index
    %c0_3 = arith.constant 0 : index
    %2 = vector.load %arg3[%c0_2, %c0_3] : memref<1x32xf32, #tpu.memory_space<vmem>>, vector<1x32xf32>
    %c0_4 = arith.constant 0 : index
    %c0_5 = arith.constant 0 : index
    %3 = vector.load %arg4[%c0_4, %c0_5] : memref<1x32xf32, #tpu.memory_space<vmem>>, vector<1x32xf32>
    %cst = arith.constant dense<0.000000e+00> : vector<9xf32>
    %4 = vector.multi_reduction <add>, %1, %cst [1] : vector<9x32xf32> to vector<9xf32>
    %5 = vector.shape_cast %4 : vector<9xf32> to vector<9x1xf32>
    %cst_6 = arith.constant 3.200000e+01 : f32
    %6 = vector.broadcast %cst_6 : f32 to vector<9x1xf32>
    %7 = arith.divf %5, %6 : vector<9x1xf32>
    %8 = vector.broadcast %7 : vector<9x1xf32> to vector<9x32xf32>
    %9 = arith.subf %1, %8 : vector<9x32xf32>
    %10 = arith.mulf %9, %9 : vector<9x32xf32>
    %cst_7 = arith.constant dense<0.000000e+00> : vector<9xf32>
    %11 = vector.multi_reduction <add>, %10, %cst_7 [1] : vector<9x32xf32> to vector<9xf32>
    %12 = vector.shape_cast %11 : vector<9xf32> to vector<9x1xf32>
    %cst_8 = arith.constant 3.200000e+01 : f32
    %13 = vector.broadcast %cst_8 : f32 to vector<9x1xf32>
    %14 = arith.divf %12, %13 : vector<9x1xf32>
    %15 = vector.broadcast %7 : vector<9x1xf32> to vector<9x32xf32>
    %16 = arith.subf %1, %15 : vector<9x32xf32>
    %cst_9 = arith.constant 9.99999974E-6 : f32
    %17 = vector.broadcast %cst_9 : f32 to vector<9x1xf32>
    %18 = arith.addf %14, %17 : vector<9x1xf32>
    %19 = math.rsqrt %18 : vector<9x1xf32>
    %20 = vector.broadcast %19 : vector<9x1xf32> to vector<9x32xf32>
    %21 = arith.mulf %16, %20 : vector<9x32xf32>
    %22 = vector.broadcast %2 : vector<1x32xf32> to vector<9x32xf32>
    %23 = arith.mulf %21, %22 : vector<9x32xf32>
    %24 = vector.broadcast %3 : vector<1x32xf32> to vector<9x32xf32>
    %25 = arith.addf %23, %24 : vector<9x32xf32>
    %26 = arith.truncf %25 : vector<9x32xf32> to vector<9x32xbf16>
    %c0_10 = arith.constant 0 : index
    %c0_11 = arith.constant 0 : index
    %27 = vector.load %arg5[%c0_10, %c0_11] : memref<32x64xbf16, #tpu.memory_space<vmem>>, vector<32x64xbf16>
    %cst_12 = arith.constant dense<0.000000e+00> : vector<9x64xf32>
    %28 = tpu.matmul %26, %27, %cst_12 {dimension_numbers = #tpu.dot_dimension_numbers<[1], [0], [0], [1], [0, 0, 1, 1], [], []>} : vector<9x32xbf16>, vector<32x64xbf16>, vector<9x64xf32> -> vector<9x64xf32>
    %c0_13 = arith.constant 0 : index
    %c0_14 = arith.constant 0 : index
    %c0_15 = arith.constant 0 : index
    %29 = vector.load %arg6[%c0_13, %c0_14, %c0_15] : memref<1x9x64xf32, #tpu.memory_space<vmem>>, vector<1x9x64xf32>
    %30 = vector.shape_cast %29 : vector<1x9x64xf32> to vector<9x64xf32>
    %31 = vector.shape_cast %28 : vector<9x64xf32> to vector<1x9x64xf32>
    tpu.vector_store %arg6[%c0_13, %c0_14, %c0_15], %31 {strides = array<i32>} : memref<1x9x64xf32, #tpu.memory_space<vmem>>, vector<1x9x64xf32>,
    return
  }
  func.func @transform_0(%arg0: i32, %arg1: i32) -> (i32, i32, i32) {
    %c0_i32 = arith.constant 0 : i32
    %c0_i32_0 = arith.constant 0 : i32
    %c0_i32_1 = arith.constant 0 : i32
    return %arg0, %c0_i32, %c0_i32_0 : i32, i32, i32
  }
  func.func @transform_1(%arg0: i32, %arg1: i32) -> (i32, i32) {
    %c0_i32 = arith.constant 0 : i32
    %c0_i32_0 = arith.constant 0 : i32
    %c0_i32_1 = arith.constant 0 : i32
    return %c0_i32, %c0_i32_0 : i32, i32
  }
  func.func @transform_2(%arg0: i32, %arg1: i32) -> (i32, i32) {
    %c0_i32 = arith.constant 0 : i32
    %c0_i32_0 = arith.constant 0 : i32
    %c0_i32_1 = arith.constant 0 : i32
    return %c0_i32, %c0_i32_0 : i32, i32
  }
  func.func @transform_3(%arg0: i32, %arg1: i32) -> (i32, i32) {
    %c0_i32 = arith.constant 0 : i32
    %c0_i32_0 = arith.constant 0 : i32
    return %c0_i32, %arg1 : i32, i32
  }
  func.func @transform_4(%arg0: i32, %arg1: i32) -> (i32, i32, i32) {
    %c0_i32 = arith.constant 0 : i32
    %c0_i32_0 = arith.constant 0 : i32
    return %arg0, %c0_i32, %arg1 : i32, i32, i32
  }
}

module attributes {stable_mosaic.version = 11 : i64} {
  func.func @gpt2_block_kernel(%arg0: i32, %arg1: memref<1x16x32xf32, #tpu.memory_space<vmem>>, %arg2: memref<1x32xf32, #tpu.memory_space<vmem>>, %arg3: memref<1x32xf32, #tpu.memory_space<vmem>>, %arg4: memref<32x96xbf16, #tpu.memory_space<vmem>>, %arg5: memref<1x96xf32, #tpu.memory_space<vmem>>, %arg6: memref<2x16x32xbf16, #tpu.memory_space<vmem>>, %arg7: memref<1x32xf32, #tpu.memory_space<vmem>>, %arg8: memref<1x32xf32, #tpu.memory_space<vmem>>, %arg9: memref<1x32xf32, #tpu.memory_space<vmem>>, %arg10: memref<32x128xbf16, #tpu.memory_space<vmem>>, %arg11: memref<1x128xf32, #tpu.memory_space<vmem>>, %arg12: memref<128x32xbf16, #tpu.memory_space<vmem>>, %arg13: memref<1x32xf32, #tpu.memory_space<vmem>>, %arg14: memref<1x16x32xf32, #tpu.memory_space<vmem>>) attributes {dimension_semantics = [#tpu.dimension_semantics<parallel>], iteration_bounds = array<i64: 2>, scalar_prefetch = 0 : i64, scratch_operands = 0 : i64, tpu.core_type = #tpu.core_type<tc>, window_params = [{transform_indices = @transform_0, window_bounds = array<i64: 1, 16, 32>}, {pipeline_mode = #tpu.pipeline_mode<synchronous>, transform_indices = @transform_1, window_bounds = array<i64: 1, 32>}, {pipeline_mode = #tpu.pipeline_mode<synchronous>, transform_indices = @transform_2, window_bounds = array<i64: 1, 32>}, {pipeline_mode = #tpu.pipeline_mode<synchronous>, transform_indices = @transform_3, window_bounds = array<i64: 32, 96>}, {pipeline_mode = #tpu.pipeline_mode<synchronous>, transform_indices = @transform_4, window_bounds = array<i64: 1, 96>}, {pipeline_mode = #tpu.pipeline_mode<synchronous>, transform_indices = @transform_5, window_bounds = array<i64: 2, 16, 32>}, {pipeline_mode = #tpu.pipeline_mode<synchronous>, transform_indices = @transform_6, window_bounds = array<i64: 1, 32>}, {pipeline_mode = #tpu.pipeline_mode<synchronous>, transform_indices = @transform_7, window_bounds = array<i64: 1, 32>}, {pipeline_mode = #tpu.pipeline_mode<synchronous>, transform_indices = @transform_8, window_bounds = array<i64: 1, 32>}, {pipeline_mode = #tpu.pipeline_mode<synchronous>, transform_indices = @transform_9, window_bounds = array<i64: 32, 128>}, {pipeline_mode = #tpu.pipeline_mode<synchronous>, transform_indices = @transform_10, window_bounds = array<i64: 1, 128>}, {pipeline_mode = #tpu.pipeline_mode<synchronous>, transform_indices = @transform_11, window_bounds = array<i64: 128, 32>}, {pipeline_mode = #tpu.pipeline_mode<synchronous>, transform_indices = @transform_12, window_bounds = array<i64: 1, 32>}, {transform_indices = @transform_13, window_bounds = array<i64: 1, 16, 32>}]} {
    %c0 = arith.constant 0 : index
    %c0_0 = arith.constant 0 : index
    %c0_1 = arith.constant 0 : index
    %0 = vector.load %arg1[%c0, %c0_0, %c0_1] : memref<1x16x32xf32, #tpu.memory_space<vmem>>, vector<1x16x32xf32>
    %1 = vector.shape_cast %0 : vector<1x16x32xf32> to vector<16x32xf32>
    %c0_2 = arith.constant 0 : index
    %c0_3 = arith.constant 0 : index
    %2 = vector.load %arg2[%c0_2, %c0_3] : memref<1x32xf32, #tpu.memory_space<vmem>>, vector<1x32xf32>
    %c0_4 = arith.constant 0 : index
    %c0_5 = arith.constant 0 : index
    %3 = vector.load %arg3[%c0_4, %c0_5] : memref<1x32xf32, #tpu.memory_space<vmem>>, vector<1x32xf32>
    %cst = arith.constant dense<0.000000e+00> : vector<16xf32>
    %4 = vector.multi_reduction <add>, %1, %cst [1] : vector<16x32xf32> to vector<16xf32>
    %5 = vector.shape_cast %4 : vector<16xf32> to vector<16x1xf32>
    %cst_6 = arith.constant 3.200000e+01 : f32
    %6 = vector.broadcast %cst_6 : f32 to vector<16x1xf32>
    %7 = arith.divf %5, %6 : vector<16x1xf32>
    %8 = vector.broadcast %7 : vector<16x1xf32> to vector<16x32xf32>
    %9 = arith.subf %1, %8 : vector<16x32xf32>
    %10 = arith.mulf %9, %9 : vector<16x32xf32>
    %cst_7 = arith.constant dense<0.000000e+00> : vector<16xf32>
    %11 = vector.multi_reduction <add>, %10, %cst_7 [1] : vector<16x32xf32> to vector<16xf32>
    %12 = vector.shape_cast %11 : vector<16xf32> to vector<16x1xf32>
    %cst_8 = arith.constant 3.200000e+01 : f32
    %13 = vector.broadcast %cst_8 : f32 to vector<16x1xf32>
    %14 = arith.divf %12, %13 : vector<16x1xf32>
    %15 = vector.broadcast %7 : vector<16x1xf32> to vector<16x32xf32>
    %16 = arith.subf %1, %15 : vector<16x32xf32>
    %cst_9 = arith.constant 9.99999974E-6 : f32
    %17 = vector.broadcast %cst_9 : f32 to vector<16x1xf32>
    %18 = arith.addf %14, %17 : vector<16x1xf32>
    %19 = math.rsqrt %18 : vector<16x1xf32>
    %20 = vector.broadcast %19 : vector<16x1xf32> to vector<16x32xf32>
    %21 = arith.mulf %16, %20 : vector<16x32xf32>
    %22 = vector.broadcast %2 : vector<1x32xf32> to vector<16x32xf32>
    %23 = arith.mulf %21, %22 : vector<16x32xf32>
    %24 = vector.broadcast %3 : vector<1x32xf32> to vector<16x32xf32>
    %25 = arith.addf %23, %24 : vector<16x32xf32>
    %26 = arith.truncf %25 : vector<16x32xf32> to vector<16x32xbf16>
    %c0_10 = arith.constant 0 : index
    %c0_11 = arith.constant 0 : index
    %27 = vector.load %arg4[%c0_10, %c0_11] : memref<32x96xbf16, #tpu.memory_space<vmem>>, vector<32x96xbf16>
    %cst_12 = arith.constant dense<0.000000e+00> : vector<16x96xf32>
    %28 = tpu.matmul %26, %27, %cst_12 {dimension_numbers = #tpu.dot_dimension_numbers<[1], [0], [0], [1], [0, 0, 1, 1], [], []>} : vector<16x32xbf16>, vector<32x96xbf16>, vector<16x96xf32> -> vector<16x96xf32>
    %c0_13 = arith.constant 0 : index
    %c0_14 = arith.constant 0 : index
    %29 = vector.load %arg5[%c0_13, %c0_14] : memref<1x96xf32, #tpu.memory_space<vmem>>, vector<1x96xf32>
    %30 = vector.broadcast %29 : vector<1x96xf32> to vector<16x96xf32>
    %31 = arith.addf %28, %30 : vector<16x96xf32>
    %32 = vector.extract_strided_slice %31 {offsets = [0, 0], sizes = [16, 16], strides = [1, 1]} : vector<16x96xf32> to vector<16x16xf32>
    %33 = vector.extract_strided_slice %31 {offsets = [0, 16], sizes = [16, 16], strides = [1, 1]} : vector<16x96xf32> to vector<16x16xf32>
    %34 = vector.shape_cast %32 : vector<16x16xf32> to vector<1x16x16xf32>
    %35 = vector.shape_cast %33 : vector<16x16xf32> to vector<1x16x16xf32>
    %36 = tpu.concatenate %34, %35 in 0 : vector<1x16x16xf32>, vector<1x16x16xf32> -> vector<2x16x16xf32>
    %37 = vector.extract_strided_slice %31 {offsets = [0, 32], sizes = [16, 16], strides = [1, 1]} : vector<16x96xf32> to vector<16x16xf32>
    %38 = vector.extract_strided_slice %31 {offsets = [0, 48], sizes = [16, 16], strides = [1, 1]} : vector<16x96xf32> to vector<16x16xf32>
    %39 = vector.shape_cast %37 : vector<16x16xf32> to vector<1x16x16xf32>
    %40 = vector.shape_cast %38 : vector<16x16xf32> to vector<1x16x16xf32>
    %41 = tpu.concatenate %39, %40 in 0 : vector<1x16x16xf32>, vector<1x16x16xf32> -> vector<2x16x16xf32>
    %42 = vector.extract_strided_slice %31 {offsets = [0, 64], sizes = [16, 16], strides = [1, 1]} : vector<16x96xf32> to vector<16x16xf32>
    %43 = vector.extract_strided_slice %31 {offsets = [0, 80], sizes = [16, 16], strides = [1, 1]} : vector<16x96xf32> to vector<16x16xf32>
    %44 = vector.shape_cast %42 : vector<16x16xf32> to vector<1x16x16xf32>
    %45 = vector.shape_cast %43 : vector<16x16xf32> to vector<1x16x16xf32>
    %46 = tpu.concatenate %44, %45 in 0 : vector<1x16x16xf32>, vector<1x16x16xf32> -> vector<2x16x16xf32>
    %47 = arith.truncf %36 : vector<2x16x16xf32> to vector<2x16x16xbf16>
    %48 = arith.truncf %41 : vector<2x16x16xf32> to vector<2x16x16xbf16>
    %49 = arith.truncf %46 : vector<2x16x16xf32> to vector<2x16x16xbf16>
    "tpu.trace_start"() <{level = 10 : i32, message = "hqd,hkd->hqk"}> : () -> ()
    %cst_15 = arith.constant dense<0.000000e+00> : vector<2x16x16xf32>
    %50 = tpu.matmul %47, %48, %cst_15 {dimension_numbers = #tpu.dot_dimension_numbers<[2], [2], [1], [1], [0, 0, 0, 1, 1, 1], [0], [0]>} : vector<2x16x16xbf16>, vector<2x16x16xbf16>, vector<2x16x16xf32> -> vector<2x16x16xf32>
    "tpu.trace_stop"() : () -> ()
    %51 = tpu.iota {dimensions = array<i32: 1>} : vector<2x16x16xi32>
    %52 = tpu.iota {dimensions = array<i32: 2>} : vector<2x16x16xi32>
    %53 = arith.cmpi sge, %51, %52 : vector<2x16x16xi32>
    %cst_16 = arith.constant -1.000000e+30 : f32
    %54 = vector.broadcast %cst_16 : f32 to vector<2x16x16xf32>
    %55 = arith.select %53, %50, %54 : vector<2x16x16xi1>, vector<2x16x16xf32>
    %cst_17 = arith.constant dense<0xFF800000> : vector<2x16xf32>
    %56 = vector.multi_reduction <maximumf>, %55, %cst_17 [2] : vector<2x16x16xf32> to vector<2x16xf32>
    %57 = vector.shape_cast %56 : vector<2x16xf32> to vector<2x16x1xf32>
    %58 = vector.broadcast %57 : vector<2x16x1xf32> to vector<2x16x16xf32>
    %59 = arith.subf %55, %58 : vector<2x16x16xf32>
    %60 = math.exp %59 : vector<2x16x16xf32>
    %cst_18 = arith.constant dense<0.000000e+00> : vector<2x16xf32>
    %61 = vector.multi_reduction <add>, %60, %cst_18 [2] : vector<2x16x16xf32> to vector<2x16xf32>
    %62 = vector.shape_cast %61 : vector<2x16xf32> to vector<2x16x1xf32>
    %63 = tpu.reciprocal %62 {approx = true} : vector<2x16x1xf32> -> vector<2x16x1xf32>
    %64 = vector.broadcast %63 : vector<2x16x1xf32> to vector<2x16x16xf32>
    %65 = arith.mulf %60, %64 : vector<2x16x16xf32>
    %66 = arith.truncf %65 : vector<2x16x16xf32> to vector<2x16x16xbf16>
    "tpu.trace_start"() <{level = 10 : i32, message = "hqk,hkd->hqd"}> : () -> ()
    %cst_19 = arith.constant dense<0.000000e+00> : vector<2x16x16xf32>
    %67 = tpu.matmul %66, %49, %cst_19 {dimension_numbers = #tpu.dot_dimension_numbers<[2], [1], [1], [2], [0, 0, 0, 1, 1, 2], [0], [0]>} : vector<2x16x16xbf16>, vector<2x16x16xbf16>, vector<2x16x16xf32> -> vector<2x16x16xf32>
    "tpu.trace_stop"() : () -> ()
    %68 = arith.truncf %67 : vector<2x16x16xf32> to vector<2x16x16xbf16>
    %c0_20 = arith.constant 0 : index
    %c0_21 = arith.constant 0 : index
    %c0_22 = arith.constant 0 : index
    %69 = vector.load %arg6[%c0_20, %c0_21, %c0_22] : memref<2x16x32xbf16, #tpu.memory_space<vmem>>, vector<2x16x32xbf16>
    "tpu.trace_start"() <{level = 10 : i32, message = "hsd,hdk->hsk"}> : () -> ()
    %cst_23 = arith.constant dense<0.000000e+00> : vector<2x16x32xf32>
    %70 = tpu.matmul %68, %69, %cst_23 {dimension_numbers = #tpu.dot_dimension_numbers<[2], [1], [1], [2], [0, 0, 0, 1, 1, 2], [0], [0]>} : vector<2x16x16xbf16>, vector<2x16x32xbf16>, vector<2x16x32xf32> -> vector<2x16x32xf32>
    "tpu.trace_stop"() : () -> ()
    %cst_24 = arith.constant dense<0.000000e+00> : vector<16x32xf32>
    %71 = vector.multi_reduction <add>, %70, %cst_24 [0] : vector<2x16x32xf32> to vector<16x32xf32>
    %72 = arith.addf %1, %71 : vector<16x32xf32>
    %c0_25 = arith.constant 0 : index
    %c0_26 = arith.constant 0 : index
    %73 = vector.load %arg7[%c0_25, %c0_26] : memref<1x32xf32, #tpu.memory_space<vmem>>, vector<1x32xf32>
    %74 = vector.broadcast %73 : vector<1x32xf32> to vector<16x32xf32>
    %75 = arith.addf %72, %74 : vector<16x32xf32>
    %c0_27 = arith.constant 0 : index
    %c0_28 = arith.constant 0 : index
    %76 = vector.load %arg8[%c0_27, %c0_28] : memref<1x32xf32, #tpu.memory_space<vmem>>, vector<1x32xf32>
    %c0_29 = arith.constant 0 : index
    %c0_30 = arith.constant 0 : index
    %77 = vector.load %arg9[%c0_29, %c0_30] : memref<1x32xf32, #tpu.memory_space<vmem>>, vector<1x32xf32>
    %cst_31 = arith.constant dense<0.000000e+00> : vector<16xf32>
    %78 = vector.multi_reduction <add>, %75, %cst_31 [1] : vector<16x32xf32> to vector<16xf32>
    %79 = vector.shape_cast %78 : vector<16xf32> to vector<16x1xf32>
    %cst_32 = arith.constant 3.200000e+01 : f32
    %80 = vector.broadcast %cst_32 : f32 to vector<16x1xf32>
    %81 = arith.divf %79, %80 : vector<16x1xf32>
    %82 = vector.broadcast %81 : vector<16x1xf32> to vector<16x32xf32>
    %83 = arith.subf %75, %82 : vector<16x32xf32>
    %84 = arith.mulf %83, %83 : vector<16x32xf32>
    %cst_33 = arith.constant dense<0.000000e+00> : vector<16xf32>
    %85 = vector.multi_reduction <add>, %84, %cst_33 [1] : vector<16x32xf32> to vector<16xf32>
    %86 = vector.shape_cast %85 : vector<16xf32> to vector<16x1xf32>
    %cst_34 = arith.constant 3.200000e+01 : f32
    %87 = vector.broadcast %cst_34 : f32 to vector<16x1xf32>
    %88 = arith.divf %86, %87 : vector<16x1xf32>
    %89 = vector.broadcast %81 : vector<16x1xf32> to vector<16x32xf32>
    %90 = arith.subf %75, %89 : vector<16x32xf32>
    %cst_35 = arith.constant 9.99999974E-6 : f32
    %91 = vector.broadcast %cst_35 : f32 to vector<16x1xf32>
    %92 = arith.addf %88, %91 : vector<16x1xf32>
    %93 = math.rsqrt %92 : vector<16x1xf32>
    %94 = vector.broadcast %93 : vector<16x1xf32> to vector<16x32xf32>
    %95 = arith.mulf %90, %94 : vector<16x32xf32>
    %96 = vector.broadcast %76 : vector<1x32xf32> to vector<16x32xf32>
    %97 = arith.mulf %95, %96 : vector<16x32xf32>
    %98 = vector.broadcast %77 : vector<1x32xf32> to vector<16x32xf32>
    %99 = arith.addf %97, %98 : vector<16x32xf32>
    %100 = arith.truncf %99 : vector<16x32xf32> to vector<16x32xbf16>
    %c0_36 = arith.constant 0 : index
    %c0_37 = arith.constant 0 : index
    %101 = vector.load %arg10[%c0_36, %c0_37] : memref<32x128xbf16, #tpu.memory_space<vmem>>, vector<32x128xbf16>
    %cst_38 = arith.constant dense<0.000000e+00> : vector<16x128xf32>
    %102 = tpu.matmul %100, %101, %cst_38 {dimension_numbers = #tpu.dot_dimension_numbers<[1], [0], [0], [1], [0, 0, 1, 1], [], []>} : vector<16x32xbf16>, vector<32x128xbf16>, vector<16x128xf32> -> vector<16x128xf32>
    %c0_39 = arith.constant 0 : index
    %c0_40 = arith.constant 0 : index
    %103 = vector.load %arg11[%c0_39, %c0_40] : memref<1x128xf32, #tpu.memory_space<vmem>>, vector<1x128xf32>
    %104 = vector.broadcast %103 : vector<1x128xf32> to vector<16x128xf32>
    %105 = arith.addf %102, %104 : vector<16x128xf32>
    %cst_41 = arith.constant 5.000000e-01 : f32
    %106 = vector.broadcast %cst_41 : f32 to vector<16x128xf32>
    %107 = arith.mulf %106, %105 : vector<16x128xf32>
    %cst_42 = arith.constant 4.471500e-02 : f32
    %108 = vector.broadcast %cst_42 : f32 to vector<16x128xf32>
    %109 = arith.mulf %108, %105 : vector<16x128xf32>
    %110 = arith.mulf %109, %105 : vector<16x128xf32>
    %111 = arith.mulf %110, %105 : vector<16x128xf32>
    %112 = arith.addf %105, %111 : vector<16x128xf32>
    %cst_43 = arith.constant 0.797884583 : f32
    %113 = vector.broadcast %cst_43 : f32 to vector<16x128xf32>
    %114 = arith.mulf %113, %112 : vector<16x128xf32>
    %115 = math.tanh %114 : vector<16x128xf32>
    %cst_44 = arith.constant 1.000000e+00 : f32
    %116 = vector.broadcast %cst_44 : f32 to vector<16x128xf32>
    %117 = arith.addf %116, %115 : vector<16x128xf32>
    %118 = arith.mulf %107, %117 : vector<16x128xf32>
    %119 = arith.truncf %118 : vector<16x128xf32> to vector<16x128xbf16>
    %c0_45 = arith.constant 0 : index
    %c0_46 = arith.constant 0 : index
    %120 = vector.load %arg12[%c0_45, %c0_46] : memref<128x32xbf16, #tpu.memory_space<vmem>>, vector<128x32xbf16>
    %cst_47 = arith.constant dense<0.000000e+00> : vector<16x32xf32>
    %121 = tpu.matmul %119, %120, %cst_47 {dimension_numbers = #tpu.dot_dimension_numbers<[1], [0], [0], [1], [0, 0, 1, 1], [], []>} : vector<16x128xbf16>, vector<128x32xbf16>, vector<16x32xf32> -> vector<16x32xf32>
    %c0_48 = arith.constant 0 : index
    %c0_49 = arith.constant 0 : index
    %122 = vector.load %arg13[%c0_48, %c0_49] : memref<1x32xf32, #tpu.memory_space<vmem>>, vector<1x32xf32>
    %123 = vector.broadcast %122 : vector<1x32xf32> to vector<16x32xf32>
    %124 = arith.addf %121, %123 : vector<16x32xf32>
    %125 = arith.addf %75, %124 : vector<16x32xf32>
    %c0_50 = arith.constant 0 : index
    %c0_51 = arith.constant 0 : index
    %c0_52 = arith.constant 0 : index
    %126 = vector.load %arg14[%c0_50, %c0_51, %c0_52] : memref<1x16x32xf32, #tpu.memory_space<vmem>>, vector<1x16x32xf32>
    %127 = vector.shape_cast %126 : vector<1x16x32xf32> to vector<16x32xf32>
    %128 = vector.shape_cast %125 : vector<16x32xf32> to vector<1x16x32xf32>
    tpu.vector_store %arg14[%c0_50, %c0_51, %c0_52], %128 {strides = array<i32>} : memref<1x16x32xf32, #tpu.memory_space<vmem>>, vector<1x16x32xf32>,
    return
  }
  func.func @transform_0(%arg0: i32) -> (i32, i32, i32) {
    %c0_i32 = arith.constant 0 : i32
    %c0_i32_0 = arith.constant 0 : i32
    %c0_i32_1 = arith.constant 0 : i32
    return %arg0, %c0_i32, %c0_i32_0 : i32, i32, i32
  }
  func.func @transform_1(%arg0: i32) -> (i32, i32) {
    %c0_i32 = arith.constant 0 : i32
    %c0_i32_0 = arith.constant 0 : i32
    %c0_i32_1 = arith.constant 0 : i32
    return %c0_i32, %c0_i32_0 : i32, i32
  }
  func.func @transform_2(%arg0: i32) -> (i32, i32) {
    %c0_i32 = arith.constant 0 : i32
    %c0_i32_0 = arith.constant 0 : i32
    %c0_i32_1 = arith.constant 0 : i32
    return %c0_i32, %c0_i32_0 : i32, i32
  }
  func.func @transform_3(%arg0: i32) -> (i32, i32) {
    %c0_i32 = arith.constant 0 : i32
    %c0_i32_0 = arith.constant 0 : i32
    %c0_i32_1 = arith.constant 0 : i32
    return %c0_i32, %c0_i32_0 : i32, i32
  }
  func.func @transform_4(%arg0: i32) -> (i32, i32) {
    %c0_i32 = arith.constant 0 : i32
    %c0_i32_0 = arith.constant 0 : i32
    %c0_i32_1 = arith.constant 0 : i32
    return %c0_i32, %c0_i32_0 : i32, i32
  }
  func.func @transform_5(%arg0: i32) -> (i32, i32, i32) {
    %c0_i32 = arith.constant 0 : i32
    %c0_i32_0 = arith.constant 0 : i32
    %c0_i32_1 = arith.constant 0 : i32
    %c0_i32_2 = arith.constant 0 : i32
    return %c0_i32, %c0_i32_0, %c0_i32_1 : i32, i32, i32
  }
  func.func @transform_6(%arg0: i32) -> (i32, i32) {
    %c0_i32 = arith.constant 0 : i32
    %c0_i32_0 = arith.constant 0 : i32
    %c0_i32_1 = arith.constant 0 : i32
    return %c0_i32, %c0_i32_0 : i32, i32
  }
  func.func @transform_7(%arg0: i32) -> (i32, i32) {
    %c0_i32 = arith.constant 0 : i32
    %c0_i32_0 = arith.constant 0 : i32
    %c0_i32_1 = arith.constant 0 : i32
    return %c0_i32, %c0_i32_0 : i32, i32
  }
  func.func @transform_8(%arg0: i32) -> (i32, i32) {
    %c0_i32 = arith.constant 0 : i32
    %c0_i32_0 = arith.constant 0 : i32
    %c0_i32_1 = arith.constant 0 : i32
    return %c0_i32, %c0_i32_0 : i32, i32
  }
  func.func @transform_9(%arg0: i32) -> (i32, i32) {
    %c0_i32 = arith.constant 0 : i32
    %c0_i32_0 = arith.constant 0 : i32
    %c0_i32_1 = arith.constant 0 : i32
    return %c0_i32, %c0_i32_0 : i32, i32
  }
  func.func @transform_10(%arg0: i32) -> (i32, i32) {
    %c0_i32 = arith.constant 0 : i32
    %c0_i32_0 = arith.constant 0 : i32
    %c0_i32_1 = arith.constant 0 : i32
    return %c0_i32, %c0_i32_0 : i32, i32
  }
  func.func @transform_11(%arg0: i32) -> (i32, i32) {
    %c0_i32 = arith.constant 0 : i32
    %c0_i32_0 = arith.constant 0 : i32
    %c0_i32_1 = arith.constant 0 : i32
    return %c0_i32, %c0_i32_0 : i32, i32
  }
  func.func @transform_12(%arg0: i32) -> (i32, i32) {
    %c0_i32 = arith.constant 0 : i32
    %c0_i32_0 = arith.constant 0 : i32
    %c0_i32_1 = arith.constant 0 : i32
    return %c0_i32, %c0_i32_0 : i32, i32
  }
  func.func @transform_13(%arg0: i32) -> (i32, i32, i32) {
    %c0_i32 = arith.constant 0 : i32
    %c0_i32_0 = arith.constant 0 : i32
    %c0_i32_1 = arith.constant 0 : i32
    return %arg0, %c0_i32, %c0_i32_0 : i32, i32, i32
  }
}

</mosaic_0001>

<llo_original>
// kernel: gpt2_decoder_forward.5
$region0: #{gpt2_decoder_forward.5}
  #allocation0 [shape = 'u32[]', space=smem, size = 0x4, offset = 0x4, fixed_abs, tag = 'smem constant byte address 0x4 - core index']
  #allocation1 [shape = 'u32[72,128]{1,0:T(1,128)}', space=vmem, size = 0x9000, scoped, tag = 'internal scratch']
  %s0 = inlined_call_operand.vmem [shape: f32[2,9,32], index: 0, kind: input, shape index: {}]
  %s1 = inlined_call_operand.vmem [shape: f32[1,32], index: 1, kind: input, shape index: {}]
  %s2 = inlined_call_operand.vmem [shape: f32[1,32], index: 2, kind: input, shape index: {}]
  %s3 = inlined_call_operand.vmem [shape: bf16[32,64], index: 3, kind: input, shape index: {}]
  %s4 = inlined_call_operand.vmem [shape: f32[2,9,64], index: 4, kind: output, shape index: {}]
  %s5 = sld [smem:[#allocation0]]
  $region49: #{gpt2_decoder_forward.5} parent=0
    _
  %s7 = ssub.s32 1, %s5
  %s8 = scalar_select 0, %s7, %s5
  loop: start=0, step=1, limit=4
  $region2: #{gpt2_decoder_forward.5} parent=0 // loop_pre_header
    _
  $region3: #{gpt2_decoder_forward.5} parent=0 // loop_header
    %s10 = sphi 0, %s14
    %p11 = scmp.ge.s32.totalorder %s10, 4
    %s17 = sphi 0, %s29
    %s18 = sphi 0, %s25
    %s19 = sphi 0, %s17
    %s20 = sphi 0, %s18
    %s21 = sphi 0, %s19
    %s22 = sphi 0, %s20
    %s32 = sphi 0, %s34
    %s35 = sphi 0, %s32
    %s36 = sphi 0, %s35
    %s52 = sphi 0, %s36
    %s56 = sphi 0, %s56
    %s58 = sphi 0, %s56
    %s59 = sphi 0, %s58
    %s73 = sphi 0, %s59
    %s77 = sphi 0, %s77
    %s79 = sphi 0, %s77
    %s80 = sphi 0, %s79
    %s94 = sphi 0, %s80
    %s100 = sphi 0, %s102
    %s103 = sphi 0, %s100
    %s104 = sphi 0, %s103
    %s120 = sphi 0, %s104
    %s128 = sphi 0, %s130
    %s131 = sphi 0, %s128
    %s132 = sphi 0, %s131
    %s148 = sphi 0, %s132
  $region4: #{gpt2_decoder_forward.5} parent=0 // loop_header_branch
    %13 = sbr.rel (%p11) target = $region8
  $region5: #{gpt2_decoder_forward.5} parent=0 // loop_body
    %s15 = ssub.s32 %s10, 1
    %s16 = ssub.s32 %s10, 2
    %s23 = sadd.s32 1, %s18
    %p24 = scmp.ge.s32.totalorder %s23, 1
    %s25 = scalar_select %p24, 0, %s23
    %s26 = sadd.s32 1, %s17
    %s27 = scalar_select %p24, %s26, %s17
    %p28 = scmp.ge.s32.totalorder %s27, 2
    %s29 = scalar_select %p28, 0, %s27
    %s30 = ssub.s32 %s17, %s29
    %p31 = scmp.eq.s32.totalorder %s30, 0
    %s33 = sadd.s32 %s32, 1
    %s34 = scalar_select %p31, %s32, %s33
    %p37 = pneg %p31
    %p38 = scmp.eq.s32.totalorder %s10, 1
    %p39 = por %p37, %p38
    %p40 = scmp.ne.s32.totalorder %s32, %s35
    %p41 = scmp.eq.s32.totalorder %s10, 0
    %p42 = por %p40, %p41
    %p43 = scmp.ne.s32.totalorder %s32, %s35
    %p44 = scmp.eq.s32.totalorder %s15, 1
    %p45 = por %p43, %p44
    %p46 = scmp.ne.s32.totalorder %s35, %s36
    %p47 = scmp.eq.s32.totalorder %s15, 0
    %p48 = por %p46, %p47
    %p49 = scmp.ne.s32.totalorder %s35, %s36
    %p50 = scmp.eq.s32.totalorder %s16, 1
    %p51 = por %p49, %p50
    %p53 = scmp.ne.s32.totalorder %s36, %s52
    %p54 = scmp.eq.s32.totalorder %s16, 0
    %p55 = por %p53, %p54
    %s57 = sadd.s32 %s56, 1
    %p60 = scmp.eq.s32.totalorder %s10, 1
    %p61 = scmp.ne.s32.totalorder %s56, %s58
    %p62 = scmp.eq.s32.totalorder %s10, 0
    %p63 = por %p61, %p62
    %p64 = scmp.ne.s32.totalorder %s56, %s58
    %p65 = scmp.eq.s32.totalorder %s15, 1
    %p66 = por %p64, %p65
    %p67 = scmp.ne.s32.totalorder %s58, %s59
    %p68 = scmp.eq.s32.totalorder %s15, 0
    %p69 = por %p67, %p68
    %p70 = scmp.ne.s32.totalorder %s58, %s59
    %p71 = scmp.eq.s32.totalorder %s16, 1
    %p72 = por %p70, %p71
    %p74 = scmp.ne.s32.totalorder %s59, %s73
    %p75 = scmp.eq.s32.totalorder %s16, 0
    %p76 = por %p74, %p75
    %s78 = sadd.s32 %s77, 1
    %p81 = scmp.eq.s32.totalorder %s10, 1
    %p82 = scmp.ne.s32.totalorder %s77, %s79
    %p83 = scmp.eq.s32.totalorder %s10, 0
    %p84 = por %p82, %p83
    %p85 = scmp.ne.s32.totalorder %s77, %s79
    %p86 = scmp.eq.s32.totalorder %s15, 1
    %p87 = por %p85, %p86
    %p88 = scmp.ne.s32.totalorder %s79, %s80
    %p89 = scmp.eq.s32.totalorder %s15, 0
    %p90 = por %p88, %p89
    %p91 = scmp.ne.s32.totalorder %s79, %s80
    %p92 = scmp.eq.s32.totalorder %s16, 1
    %p93 = por %p91, %p92
    %p95 = scmp.ne.s32.totalorder %s80, %s94
    %p96 = scmp.eq.s32.totalorder %s16, 0
    %p97 = por %p95, %p96
    %s98 = ssub.s32 %s18, %s25
    %p99 = scmp.eq.s32.totalorder %s98, 0
    %s101 = sadd.s32 %s100, 1
    %s102 = scalar_select %p99, %s100, %s101
    %p105 = pneg %p99
    %p106 = scmp.eq.s32.totalorder %s10, 1
    %p107 = por %p105, %p106
    %p108 = scmp.ne.s32.totalorder %s100, %s103
    %p109 = scmp.eq.s32.totalorder %s10, 0
    %p110 = por %p108, %p109
    %p111 = scmp.ne.s32.totalorder %s100, %s103
    %p112 = scmp.eq.s32.totalorder %s15, 1
    %p113 = por %p111, %p112
    %p114 = scmp.ne.s32.totalorder %s103, %s104
    %p115 = scmp.eq.s32.totalorder %s15, 0
    %p116 = por %p114, %p115
    %p117 = scmp.ne.s32.totalorder %s103, %s104
    %p118 = scmp.eq.s32.totalorder %s16, 1
    %p119 = por %p117, %p118
    %p121 = scmp.ne.s32.totalorder %s104, %s120
    %p122 = scmp.eq.s32.totalorder %s16, 0
    %p123 = por %p121, %p122
    %s124 = ssub.s32 %s17, %s29
    %s125 = ssub.s32 %s18, %s25
    %s126 = sor.u32 %s124, %s125
    %p127 = scmp.eq.s32.totalorder %s126, 0
    %s129 = sadd.s32 %s128, 1
    %s130 = scalar_select %p127, %s128, %s129
    %p133 = pneg %p127
    %p134 = scmp.eq.s32.totalorder %s10, 1
    %p135 = por %p133, %p134
    %p136 = scmp.ne.s32.totalorder %s128, %s131
    %p137 = scmp.eq.s32.totalorder %s10, 0
    %p138 = por %p136, %p137
    %p139 = scmp.ne.s32.totalorder %s128, %s131
    %p140 = scmp.eq.s32.totalorder %s15, 1
    %p141 = por %p139, %p140
    %p142 = scmp.ne.s32.totalorder %s131, %s132
    %p143 = scmp.eq.s32.totalorder %s15, 0
    %p144 = por %p142, %p143
    %p145 = scmp.ne.s32.totalorder %s131, %s132
    %p146 = scmp.eq.s32.totalorder %s16, 1
    %p147 = por %p145, %p146
    %p149 = scmp.ne.s32.totalorder %s132, %s148
    %p150 = scmp.eq.s32.totalorder %s16, 0
    %p151 = por %p149, %p150
    %p152 = scmp.le.s32.totalorder 1, %s10
    %p153 = scmp.lt.s32.totalorder %s10, 3
    %p154 = pnand %p152, %p153
    %p155 = pneg %p154
    // Predicated region
    $region9: #{gpt2_decoder_forward.5} parent=5 // pred_check
      _
    $region10: #{gpt2_decoder_forward.5} parent=5 // pred_check_branch
      %157 = sbr.rel (%p154) target = $region12
    $region11: #{gpt2_decoder_forward.5} parent=5 // pred_region
      %s158 = ssub.s32 %s10, 1
      // Predicated region
      $region13: #{gpt2_decoder_forward.5} parent=11 // pred_check
        %p159 = pneg %p69
      $region14: #{gpt2_decoder_forward.5} parent=11 // pred_check_branch
        %161 = sbr.rel (%p159) target = $region16
      $region15: #{gpt2_decoder_forward.5} parent=11 // pred_region
        _
      $region16: #{gpt2_decoder_forward.5} parent=11 // pred_fallthru
        _
      // Predicated region
      $region17: #{gpt2_decoder_forward.5} parent=11 // pred_check
        %p162 = pneg %p90
      $region18: #{gpt2_decoder_forward.5} parent=11 // pred_check_branch
        %164 = sbr.rel (%p162) target = $region20
      $region19: #{gpt2_decoder_forward.5} parent=11 // pred_region
        _
      $region20: #{gpt2_decoder_forward.5} parent=11 // pred_fallthru
        _
      // Predicated region
      $region21: #{gpt2_decoder_forward.5} parent=11 // pred_check
        %p165 = pneg %p116
      $region22: #{gpt2_decoder_forward.5} parent=11 // pred_check_branch
        %167 = sbr.rel (%p165) target = $region24
      $region23: #{gpt2_decoder_forward.5} parent=11 // pred_region
        %p168 = scmp.lt.s32.totalorder %s20, 0
        %s169 = scalar_select %p168, %s20, 0
        %s170 = smul.addr %s169, 4
        %s171 = scalar_lea.vmem %s3, %s170
      $region24: #{gpt2_decoder_forward.5} parent=11 // pred_fallthru
        _
    $region12: #{gpt2_decoder_forward.5} parent=5 // pred_fallthru
      _
    %p172 = scmp.lt.s32.totalorder %s10, 2
    // Predicated region
    $region25: #{gpt2_decoder_forward.5} parent=5 // pred_check
      %p173 = pneg %p172
    $region26: #{gpt2_decoder_forward.5} parent=5 // pred_check_branch
      %175 = sbr.rel (%p173) target = $region28
    $region27: #{gpt2_decoder_forward.5} parent=5 // pred_region
      // Predicated region
      $region29: #{gpt2_decoder_forward.5} parent=27 // pred_check
        %p176 = pneg %p42
      $region30: #{gpt2_decoder_forward.5} parent=27 // pred_check_branch
        %178 = sbr.rel (%p176) target = $region32
      $region31: #{gpt2_decoder_forward.5} parent=27 // pred_region
        %p179 = scmp.lt.s32.totalorder %s17, 1
        %s180 = scalar_select %p179, %s17, 1
        %s181 = smul.addr %s180, 2
        %s182 = smul.addr %s181, 8
        %s183 = scalar_lea.vmem %s0, %s182
      $region32: #{gpt2_decoder_forward.5} parent=27 // pred_fallthru
        _
    $region28: #{gpt2_decoder_forward.5} parent=5 // pred_fallthru
      _
    %p184 = scmp.le.s32.totalorder 1, %s10
    %p185 = scmp.lt.s32.totalorder %s10, 3
    %p186 = pnand %p184, %p185
    %p187 = pneg %p186
    // Predicated region
    $region33: #{gpt2_decoder_forward.5} parent=5 // pred_check
      _
    $region34: #{gpt2_decoder_forward.5} parent=5 // pred_check_branch
      %189 = sbr.rel (%p186) target = $region36
    $region35: #{gpt2_decoder_forward.5} parent=5 // pred_region
      %s190 = ssub.s32 %s10, 1
      %p191 = scmp.lt.s32.totalorder %s19, 1
      %s192 = scalar_select %p191, %s19, 1
      %s193 = smul.addr %s192, 2
      %s194 = smul.addr %s193, 8
      %s195 = scalar_lea.vmem %s0, %s194
      %p196 = pneg %p48
      %p197 = pneg %p45
      %p198 = pneg %p69
      %p199 = pneg %p66
      %p200 = pneg %p90
      %p201 = pneg %p87
      %p202 = scmp.lt.s32.totalorder %s20, 0
      %s203 = scalar_select %p202, %s20, 0
      %s204 = smul.addr %s203, 4
      %s205 = scalar_lea.vmem %s3, %s204
      %p206 = pneg %p116
      %p207 = pneg %p113
      %p208 = pneg %p144
      %p209 = pneg %p141
      %p210 = scmp.lt.s32.totalorder %s19, 1
      %s211 = scalar_select %p210, %s19, 1
      %p212 = scmp.lt.s32.totalorder %s20, 0
      %s213 = scalar_select %p212, %s20, 0
      %s214 = smul.addr %s211, 2
      %s215 = sadd.s32 %s213, %s214
      %s216 = smul.addr %s215, 8
      %s217 = scalar_lea.vmem %s4, %s216
      %p218 = scmp.lt.s32.totalorder %s19, 1
      %s219 = scalar_select %p218, %s19, 1
      %s220 = smul.addr %s219, 2
      %s221 = smul.addr %s220, 8
      %s222 = scalar_lea.vmem %s0, %s221
      %p223 = scmp.lt.s32.totalorder %s20, 0
      %s224 = scalar_select %p223, %s20, 0
      %s225 = smul.addr %s224, 4
      %s226 = scalar_lea.vmem %s3, %s225
      %p227 = scmp.lt.s32.totalorder %s19, 1
      %s228 = scalar_select %p227, %s19, 1
      %p229 = scmp.lt.s32.totalorder %s20, 0
      %s230 = scalar_select %p229, %s20, 0
      %s231 = smul.addr %s228, 2
      %s232 = sadd.s32 %s230, %s231
      %s233 = smul.addr %s232, 8
      %s234 = scalar_lea.vmem %s4, %s233
      %v236 = vld [vmem:[%s222] sm:$0xff]
      %v237 = vld [vmem:[%s222 + $0x8] sm:$0x1]
      %v238 = vld [vmem:[%s1] sm:$0x1]
      %v239 = vld [vmem:[%s2] sm:$0x1]
      %vm240 = vcmask 261120
      %v241 = vsel %vm240, %v236, 0.0
      %242 = vadd.xlane.f32.xlu0 %v241
      %v243 = vpop.xlane.xlu0 %242
      %vm244 = vcmask 253952
      %v245 = vsel %vm244, %v237, 0.0
      %246 = vadd.xlane.f32.xlu0 %v245
      %v247 = vpop.xlane.xlu0 %246
      %v248 = vrcp.pop 32.0
      %v249 = vmul.f32 32.0, %v248
      %v250 = vsub.f32 1.0, %v249
      %v251 = vmul.f32 %v248, %v250
      %v252 = vadd.f32 %v248, %v251
      %vm253 = vweird.f32 %v248
      %v254 = vsel %vm253, %v248, %v252
      %v255 = vmul.f32 %v243, %v254
      %v256 = vmul.f32 %v247, %v254
      %v257 = vsub.f32 %v236, %v255
      %v258 = vsub.f32 %v237, %v256
      %v259 = vmul.f32 %v257, %v257
      %v260 = vmul.f32 %v258, %v258
      %v261 = vsel %vm240, %v259, 0.0
      %262 = vadd.xlane.f32.xlu0 %v261
      %v263 = vpop.xlane.xlu0 %262
      %v264 = vsel %vm244, %v260, 0.0
      %265 = vadd.xlane.f32.xlu0 %v264
      %v266 = vpop.xlane.xlu0 %265
      %v267 = vmul.f32 %v263, %v254
      %v268 = vmul.f32 %v266, %v254
      %v269 = vadd.f32 %v267, 1e-05
      %v270 = vadd.f32 %v268, 1e-05
      %v271 = vrsqrt.pop %v269
      %v272 = vmul.f32 %v271, %v269
      %v273 = vmul.f32 %v272, %v271
      %v274 = vmul.f32 0.5, %v273
      %v275 = vsub.f32 1.5, %v274
      %v276 = vmul.f32 %v271, %v275
      %vm277 = vweird.f32 %v269
      %vm278 = vweird.f32 %v271
      %vm279 = vmor %vm277, %vm278
      %v280 = vsel %vm279, %v271, %v276
      %v281 = vrsqrt.pop %v270
      %v282 = vmul.f32 %v281, %v270
      %v283 = vmul.f32 %v282, %v281
      %v284 = vmul.f32 0.5, %v283
      %v285 = vsub.f32 1.5, %v284
      %v286 = vmul.f32 %v281, %v285
      %vm287 = vweird.f32 %v270
      %vm288 = vweird.f32 %v281
      %vm289 = vmor %vm287, %vm288
      %v290 = vsel %vm289, %v281, %v286
      %v291 = vmul.f32 %v257, %v280
      %v292 = vmul.f32 %v258, %v290
      %v294 = vperm.slane %v238, 0
      %v296 = vmul.f32 %v291, %v294
      %v297 = vmul.f32 %v292, %v294
      %v299 = vperm.slane %v239, 0
      %v301 = vadd.f32 %v296, %v299
      %v302 = vadd.f32 %v297, %v299
      %v303 = vpack.c.bf16 %v302, %v301
      %v304 = vld [vmem:[%s226] sm:$0xf]
      %v305 = vld [vmem:[%s226 + $0x4] sm:$0xf]
      %v306 = vld [vmem:[%s226 + $0x8] sm:$0xf]
      %v307 = vld [vmem:[%s226 + $0xc] sm:$0xf]
      %v312 = vunpack.c.l.b16 %v304
      %v313 = vunpack.c.l.b16 %v305
      %v314 = vunpack.c.l.b16 %v306
      %v315 = vunpack.c.l.b16 %v307
      %v316 = vpack.c.b16 %v313, %v312
      %v317 = vpack.c.b16 %v315, %v314
      %v321 = vsel %vm240, %v303, 0
      %323 = vmatpush.bf16.msra.mxu0 0
      %324 = vmatpush.bf16.msra.mxu0 0
      %325 = vmatpush.bf16.msra.mxu0 0
      %326 = vmatpush.bf16.msra.mxu0 0
      %327 = vmatpush.bf16.msra.mxu0 0
      %328 = vmatpush.bf16.msra.mxu0 0
      %329 = vmatpush.bf16.msra.mxu0 %v317
      %330 = vmatpush.bf16.msra.mxu0 %v316
      %331 = vmatmul.bf16.gmra.mxu0 %v321
      %v332 = vpop.f32.mrf.mxu0
      %v333 = vadd.f32 0.0, %v332
      %v334 = vpop.f32.mrf.mxu0
      %v335 = vadd.f32 0.0, %v334
      %336 = vdwg.mxu0
      %vm337 = vcmask 523264
      %338 = vst.msk [vmem:[%s234] sm:$0xff] %vm337, %v333
      %vm339 = vcmask 516096
      %340 = vst.msk [vmem:[%s234 + $0x8] sm:$0x1] %vm339, %v335
      %p341 = scmp.lt.s32.totalorder %s19, 1
      %s342 = scalar_select %p341, %s19, 1
      %p343 = scmp.lt.s32.totalorder %s20, 0
      %s344 = scalar_select %p343, %s20, 0
      %s345 = smul.addr %s342, 2
      %s346 = sadd.s32 %s344, %s345
      %s347 = smul.addr %s346, 8
      %s348 = scalar_lea.vmem %s4, %s347
      // Predicated region
      $region37: #{gpt2_decoder_forward.5} parent=35 // pred_check
        %p349 = pneg %p141
      $region38: #{gpt2_decoder_forward.5} parent=35 // pred_check_branch
        %351 = sbr.rel (%p349) target = $region40
      $region39: #{gpt2_decoder_forward.5} parent=35 // pred_region
        _
      $region40: #{gpt2_decoder_forward.5} parent=35 // pred_fallthru
        _
    $region36: #{gpt2_decoder_forward.5} parent=5 // pred_fallthru
      _
    %p352 = scmp.le.s32.totalorder 2, %s10
    // Predicated region
    $region41: #{gpt2_decoder_forward.5} parent=5 // pred_check
      %p353 = pneg %p352
    $region42: #{gpt2_decoder_forward.5} parent=5 // pred_check_branch
      %355 = sbr.rel (%p353) target = $region44
    $region43: #{gpt2_decoder_forward.5} parent=5 // pred_region
      %s356 = ssub.s32 %s10, 2
      // Predicated region
      $region45: #{gpt2_decoder_forward.5} parent=43 // pred_check
        %p357 = pneg %p147
      $region46: #{gpt2_decoder_forward.5} parent=43 // pred_check_branch
        %359 = sbr.rel (%p357) target = $region48
      $region47: #{gpt2_decoder_forward.5} parent=43 // pred_region
        %p360 = scmp.lt.s32.totalorder %s21, 1
        %s361 = scalar_select %p360, %s21, 1
        %p362 = scmp.lt.s32.totalorder %s22, 0
        %s363 = scalar_select %p362, %s22, 0
        %s364 = smul.addr %s361, 2
        %s365 = sadd.s32 %s363, %s364
        %s366 = smul.addr %s365, 8
        %s367 = scalar_lea.vmem %s4, %s366
      $region48: #{gpt2_decoder_forward.5} parent=43 // pred_fallthru
        _
    $region44: #{gpt2_decoder_forward.5} parent=5 // pred_fallthru
      _
  $region6: #{gpt2_decoder_forward.5} parent=0 // loop_footer
    %s14 = sadd.s32 1, %s10
  $region7: #{gpt2_decoder_forward.5} parent=0 // loop_footer_branch
    %9 = sbr.rel target = $region3
  $region8: #{gpt2_decoder_forward.5} parent=0 // loop_exit
    _

// kernel: gpt2_decoder_forward.3
$region0: #{gpt2_decoder_forward.3}
  #allocation0 [shape = 'u32[]', space=smem, size = 0x4, offset = 0x4, fixed_abs, tag = 'smem constant byte address 0x4 - core index']
  #allocation1 [shape = 'u32[72,128]{1,0:T(1,128)}', space=vmem, size = 0x9000, scoped, tag = 'internal scratch']
  %s0 = inlined_call_operand.vmem [shape: f32[2,16,32], index: 0, kind: input, shape index: {}]
  %s1 = inlined_call_operand.vmem [shape: f32[1,32], index: 1, kind: input, shape index: {}, may-alias: {1,7}]
  %s2 = inlined_call_operand.vmem [shape: f32[1,32], index: 2, kind: input, shape index: {}, may-alias: {2,6,8,12}]
  %s3 = inlined_call_operand.vmem [shape: bf16[32,96], index: 3, kind: input, shape index: {}]
  %s4 = inlined_call_operand.vmem [shape: f32[1,96], index: 4, kind: input, shape index: {}]
  %s5 = inlined_call_operand.vmem [shape: bf16[2,16,32], index: 5, kind: input, shape index: {}]
  %s6 = inlined_call_operand.vmem [shape: f32[1,32], index: 6, kind: input, shape index: {}, may-alias: {2,6,8,12}]
  %s7 = inlined_call_operand.vmem [shape: f32[1,32], index: 7, kind: input, shape index: {}, may-alias: {1,7}]
  %s8 = inlined_call_operand.vmem [shape: f32[1,32], index: 8, kind: input, shape index: {}, may-alias: {2,6,8,12}]
  %s9 = inlined_call_operand.vmem [shape: bf16[32,128], index: 9, kind: input, shape index: {}]
  %s10 = inlined_call_operand.vmem [shape: f32[1,128], index: 10, kind: input, shape index: {}]
  %s11 = inlined_call_operand.vmem [shape: bf16[128,32], index: 11, kind: input, shape index: {}]
  %s12 = inlined_call_operand.vmem [shape: f32[1,32], index: 12, kind: input, shape index: {}, may-alias: {2,6,8,12}]
  %s13 = inlined_call_operand.vmem [shape: f32[2,16,32], index: 13, kind: output, shape index: {}]
  %s14 = sld [smem:[#allocation0]]
  $region85: #{gpt2_decoder_forward.3} parent=0
    _
  %s16 = ssub.s32 1, %s14
  %s17 = scalar_select 0, %s16, %s14
  loop: start=0, step=1, limit=4
  $region2: #{gpt2_decoder_forward.3} parent=0 // loop_pre_header
    _
  $region3: #{gpt2_decoder_forward.3} parent=0 // loop_header
    %s19 = sphi 0, %s23
    %p20 = scmp.ge.s32.totalorder %s19, 4
    %s29 = sphi 0, %s31
    %s32 = sphi 0, %s29
    %s33 = sphi 0, %s32
    %s49 = sphi 0, %s33
    %s53 = sphi 0, %s53
    %s55 = sphi 0, %s53
    %s56 = sphi 0, %s55
    %s70 = sphi 0, %s56
    %s74 = sphi 0, %s74
    %s76 = sphi 0, %s74
    %s77 = sphi 0, %s76
    %s91 = sphi 0, %s77
    %s95 = sphi 0, %s95
    %s97 = sphi 0, %s95
    %s98 = sphi 0, %s97
    %s112 = sphi 0, %s98
    %s116 = sphi 0, %s116
    %s118 = sphi 0, %s116
    %s119 = sphi 0, %s118
    %s133 = sphi 0, %s119
    %s137 = sphi 0, %s137
    %s139 = sphi 0, %s137
    %s140 = sphi 0, %s139
    %s154 = sphi 0, %s140
    %s158 = sphi 0, %s158
    %s160 = sphi 0, %s158
    %s161 = sphi 0, %s160
    %s175 = sphi 0, %s161
    %s179 = sphi 0, %s179
    %s181 = sphi 0, %s179
    %s182 = sphi 0, %s181
    %s196 = sphi 0, %s182
    %s200 = sphi 0, %s200
    %s202 = sphi 0, %s200
    %s203 = sphi 0, %s202
    %s217 = sphi 0, %s203
    %s221 = sphi 0, %s221
    %s223 = sphi 0, %s221
    %s224 = sphi 0, %s223
    %s238 = sphi 0, %s224
    %s242 = sphi 0, %s242
    %s244 = sphi 0, %s242
    %s245 = sphi 0, %s244
    %s259 = sphi 0, %s245
    %s263 = sphi 0, %s263
    %s265 = sphi 0, %s263
    %s266 = sphi 0, %s265
    %s280 = sphi 0, %s266
    %s284 = sphi 0, %s284
    %s286 = sphi 0, %s284
    %s287 = sphi 0, %s286
    %s301 = sphi 0, %s287
    %s307 = sphi 0, %s309
    %s310 = sphi 0, %s307
    %s311 = sphi 0, %s310
    %s327 = sphi 0, %s311
  $region4: #{gpt2_decoder_forward.3} parent=0 // loop_header_branch
    %22 = sbr.rel (%p20) target = $region8
  $region5: #{gpt2_decoder_forward.3} parent=0 // loop_body
    %s24 = ssub.s32 %s19, 1
    %s25 = ssub.s32 %s19, 2
    %s26 = sadd.s32 %s19, 1
    %s27 = ssub.s32 %s19, %s26
    %p28 = scmp.eq.s32.totalorder %s27, 0
    %s30 = sadd.s32 %s29, 1
    %s31 = scalar_select %p28, %s29, %s30
    %p34 = pneg %p28
    %p35 = scmp.eq.s32.totalorder %s19, 1
    %p36 = por %p34, %p35
    %p37 = scmp.ne.s32.totalorder %s29, %s32
    %p38 = scmp.eq.s32.totalorder %s19, 0
    %p39 = por %p37, %p38
    %p40 = scmp.ne.s32.totalorder %s29, %s32
    %p41 = scmp.eq.s32.totalorder %s24, 1
    %p42 = por %p40, %p41
    %p43 = scmp.ne.s32.totalorder %s32, %s33
    %p44 = scmp.eq.s32.totalorder %s24, 0
    %p45 = por %p43, %p44
    %p46 = scmp.ne.s32.totalorder %s32, %s33
    %p47 = scmp.eq.s32.totalorder %s25, 1
    %p48 = por %p46, %p47
    %p50 = scmp.ne.s32.totalorder %s33, %s49
    %p51 = scmp.eq.s32.totalorder %s25, 0
    %p52 = por %p50, %p51
    %s54 = sadd.s32 %s53, 1
    %p57 = scmp.eq.s32.totalorder %s19, 1
    %p58 = scmp.ne.s32.totalorder %s53, %s55
    %p59 = scmp.eq.s32.totalorder %s19, 0
    %p60 = por %p58, %p59
    %p61 = scmp.ne.s32.totalorder %s53, %s55
    %p62 = scmp.eq.s32.totalorder %s24, 1
    %p63 = por %p61, %p62
    %p64 = scmp.ne.s32.totalorder %s55, %s56
    %p65 = scmp.eq.s32.totalorder %s24, 0
    %p66 = por %p64, %p65
    %p67 = scmp.ne.s32.totalorder %s55, %s56
    %p68 = scmp.eq.s32.totalorder %s25, 1
    %p69 = por %p67, %p68
    %p71 = scmp.ne.s32.totalorder %s56, %s70
    %p72 = scmp.eq.s32.totalorder %s25, 0
    %p73 = por %p71, %p72
    %s75 = sadd.s32 %s74, 1
    %p78 = scmp.eq.s32.totalorder %s19, 1
    %p79 = scmp.ne.s32.totalorder %s74, %s76
    %p80 = scmp.eq.s32.totalorder %s19, 0
    %p81 = por %p79, %p80
    %p82 = scmp.ne.s32.totalorder %s74, %s76
    %p83 = scmp.eq.s32.totalorder %s24, 1
    %p84 = por %p82, %p83
    %p85 = scmp.ne.s32.totalorder %s76, %s77
    %p86 = scmp.eq.s32.totalorder %s24, 0
    %p87 = por %p85, %p86
    %p88 = scmp.ne.s32.totalorder %s76, %s77
    %p89 = scmp.eq.s32.totalorder %s25, 1
    %p90 = por %p88, %p89
    %p92 = scmp.ne.s32.totalorder %s77, %s91
    %p93 = scmp.eq.s32.totalorder %s25, 0
    %p94 = por %p92, %p93
    %s96 = sadd.s32 %s95, 1
    %p99 = scmp.eq.s32.totalorder %s19, 1
    %p100 = scmp.ne.s32.totalorder %s95, %s97
    %p101 = scmp.eq.s32.totalorder %s19, 0
    %p102 = por %p100, %p101
    %p103 = scmp.ne.s32.totalorder %s95, %s97
    %p104 = scmp.eq.s32.totalorder %s24, 1
    %p105 = por %p103, %p104
    %p106 = scmp.ne.s32.totalorder %s97, %s98
    %p107 = scmp.eq.s32.totalorder %s24, 0
    %p108 = por %p106, %p107
    %p109 = scmp.ne.s32.totalorder %s97, %s98
    %p110 = scmp.eq.s32.totalorder %s25, 1
    %p111 = por %p109, %p110
    %p113 = scmp.ne.s32.totalorder %s98, %s112
    %p114 = scmp.eq.s32.totalorder %s25, 0
    %p115 = por %p113, %p114
    %s117 = sadd.s32 %s116, 1
    %p120 = scmp.eq.s32.totalorder %s19, 1
    %p121 = scmp.ne.s32.totalorder %s116, %s118
    %p122 = scmp.eq.s32.totalorder %s19, 0
    %p123 = por %p121, %p122
    %p124 = scmp.ne.s32.totalorder %s116, %s118
    %p125 = scmp.eq.s32.totalorder %s24, 1
    %p126 = por %p124, %p125
    %p127 = scmp.ne.s32.totalorder %s118, %s119
    %p128 = scmp.eq.s32.totalorder %s24, 0
    %p129 = por %p127, %p128
    %p130 = scmp.ne.s32.totalorder %s118, %s119
    %p131 = scmp.eq.s32.totalorder %s25, 1
    %p132 = por %p130, %p131
    %p134 = scmp.ne.s32.totalorder %s119, %s133
    %p135 = scmp.eq.s32.totalorder %s25, 0
    %p136 = por %p134, %p135
    %s138 = sadd.s32 %s137, 1
    %p141 = scmp.eq.s32.totalorder %s19, 1
    %p142 = scmp.ne.s32.totalorder %s137, %s139
    %p143 = scmp.eq.s32.totalorder %s19, 0
    %p144 = por %p142, %p143
    %p145 = scmp.ne.s32.totalorder %s137, %s139
    %p146 = scmp.eq.s32.totalorder %s24, 1
    %p147 = por %p145, %p146
    %p148 = scmp.ne.s32.totalorder %s139, %s140
    %p149 = scmp.eq.s32.totalorder %s24, 0
    %p150 = por %p148, %p149
    %p151 = scmp.ne.s32.totalorder %s139, %s140
    %p152 = scmp.eq.s32.totalorder %s25, 1
    %p153 = por %p151, %p152
    %p155 = scmp.ne.s32.totalorder %s140, %s154
    %p156 = scmp.eq.s32.totalorder %s25, 0
    %p157 = por %p155, %p156
    %s159 = sadd.s32 %s158, 1
    %p162 = scmp.eq.s32.totalorder %s19, 1
    %p163 = scmp.ne.s32.totalorder %s158, %s160
    %p164 = scmp.eq.s32.totalorder %s19, 0
    %p165 = por %p163, %p164
    %p166 = scmp.ne.s32.totalorder %s158, %s160
    %p167 = scmp.eq.s32.totalorder %s24, 1
    %p168 = por %p166, %p167
    %p169 = scmp.ne.s32.totalorder %s160, %s161
    %p170 = scmp.eq.s32.totalorder %s24, 0
    %p171 = por %p169, %p170
    %p172 = scmp.ne.s32.totalorder %s160, %s161
    %p173 = scmp.eq.s32.totalorder %s25, 1
    %p174 = por %p172, %p173
    %p176 = scmp.ne.s32.totalorder %s161, %s175
    %p177 = scmp.eq.s32.totalorder %s25, 0
    %p178 = por %p176, %p177
    %s180 = sadd.s32 %s179, 1
    %p183 = scmp.eq.s32.totalorder %s19, 1
    %p184 = scmp.ne.s32.totalorder %s179, %s181
    %p185 = scmp.eq.s32.totalorder %s19, 0
    %p186 = por %p184, %p185
    %p187 = scmp.ne.s32.totalorder %s179, %s181
    %p188 = scmp.eq.s32.totalorder %s24, 1
    %p189 = por %p187, %p188
    %p190 = scmp.ne.s32.totalorder %s181, %s182
    %p191 = scmp.eq.s32.totalorder %s24, 0
    %p192 = por %p190, %p191
    %p193 = scmp.ne.s32.totalorder %s181, %s182
    %p194 = scmp.eq.s32.totalorder %s25, 1
    %p195 = por %p193, %p194
    %p197 = scmp.ne.s32.totalorder %s182, %s196
    %p198 = scmp.eq.s32.totalorder %s25, 0
    %p199 = por %p197, %p198
    %s201 = sadd.s32 %s200, 1
    %p204 = scmp.eq.s32.totalorder %s19, 1
    %p205 = scmp.ne.s32.totalorder %s200, %s202
    %p206 = scmp.eq.s32.totalorder %s19, 0
    %p207 = por %p205, %p206
    %p208 = scmp.ne.s32.totalorder %s200, %s202
    %p209 = scmp.eq.s32.totalorder %s24, 1
    %p210 = por %p208, %p209
    %p211 = scmp.ne.s32.totalorder %s202, %s203
    %p212 = scmp.eq.s32.totalorder %s24, 0
    %p213 = por %p211, %p212
    %p214 = scmp.ne.s32.totalorder %s202, %s203
    %p215 = scmp.eq.s32.totalorder %s25, 1
    %p216 = por %p214, %p215
    %p218 = scmp.ne.s32.totalorder %s203, %s217
    %p219 = scmp.eq.s32.totalorder %s25, 0
    %p220 = por %p218, %p219
    %s222 = sadd.s32 %s221, 1
    %p225 = scmp.eq.s32.totalorder %s19, 1
    %p226 = scmp.ne.s32.totalorder %s221, %s223
    %p227 = scmp.eq.s32.totalorder %s19, 0
    %p228 = por %p226, %p227
    %p229 = scmp.ne.s32.totalorder %s221, %s223
    %p230 = scmp.eq.s32.totalorder %s24, 1
    %p231 = por %p229, %p230
    %p232 = scmp.ne.s32.totalorder %s223, %s224
    %p233 = scmp.eq.s32.totalorder %s24, 0
    %p234 = por %p232, %p233
    %p235 = scmp.ne.s32.totalorder %s223, %s224
    %p236 = scmp.eq.s32.totalorder %s25, 1
    %p237 = por %p235, %p236
    %p239 = scmp.ne.s32.totalorder %s224, %s238
    %p240 = scmp.eq.s32.totalorder %s25, 0
    %p241 = por %p239, %p240
    %s243 = sadd.s32 %s242, 1
    %p246 = scmp.eq.s32.totalorder %s19, 1
    %p247 = scmp.ne.s32.totalorder %s242, %s244
    %p248 = scmp.eq.s32.totalorder %s19, 0
    %p249 = por %p247, %p248
    %p250 = scmp.ne.s32.totalorder %s242, %s244
    %p251 = scmp.eq.s32.totalorder %s24, 1
    %p252 = por %p250, %p251
    %p253 = scmp.ne.s32.totalorder %s244, %s245
    %p254 = scmp.eq.s32.totalorder %s24, 0
    %p255 = por %p253, %p254
    %p256 = scmp.ne.s32.totalorder %s244, %s245
    %p257 = scmp.eq.s32.totalorder %s25, 1
    %p258 = por %p256, %p257
    %p260 = scmp.ne.s32.totalorder %s245, %s259
    %p261 = scmp.eq.s32.totalorder %s25, 0
    %p262 = por %p260, %p261
    %s264 = sadd.s32 %s263, 1
    %p267 = scmp.eq.s32.totalorder %s19, 1
    %p268 = scmp.ne.s32.totalorder %s263, %s265
    %p269 = scmp.eq.s32.totalorder %s19, 0
    %p270 = por %p268, %p269
    %p271 = scmp.ne.s32.totalorder %s263, %s265
    %p272 = scmp.eq.s32.totalorder %s24, 1
    %p273 = por %p271, %p272
    %p274 = scmp.ne.s32.totalorder %s265, %s266
    %p275 = scmp.eq.s32.totalorder %s24, 0
    %p276 = por %p274, %p275
    %p277 = scmp.ne.s32.totalorder %s265, %s266
    %p278 = scmp.eq.s32.totalorder %s25, 1
    %p279 = por %p277, %p278
    %p281 = scmp.ne.s32.totalorder %s266, %s280
    %p282 = scmp.eq.s32.totalorder %s25, 0
    %p283 = por %p281, %p282
    %s285 = sadd.s32 %s284, 1
    %p288 = scmp.eq.s32.totalorder %s19, 1
    %p289 = scmp.ne.s32.totalorder %s284, %s286
    %p290 = scmp.eq.s32.totalorder %s19, 0
    %p291 = por %p289, %p290
    %p292 = scmp.ne.s32.totalorder %s284, %s286
    %p293 = scmp.eq.s32.totalorder %s24, 1
    %p294 = por %p292, %p293
    %p295 = scmp.ne.s32.totalorder %s286, %s287
    %p296 = scmp.eq.s32.totalorder %s24, 0
    %p297 = por %p295, %p296
    %p298 = scmp.ne.s32.totalorder %s286, %s287
    %p299 = scmp.eq.s32.totalorder %s25, 1
    %p300 = por %p298, %p299
    %p302 = scmp.ne.s32.totalorder %s287, %s301
    %p303 = scmp.eq.s32.totalorder %s25, 0
    %p304 = por %p302, %p303
    %s305 = ssub.s32 %s19, %s26
    %p306 = scmp.eq.s32.totalorder %s305, 0
    %s308 = sadd.s32 %s307, 1
    %s309 = scalar_select %p306, %s307, %s308
    %p312 = pneg %p306
    %p313 = scmp.eq.s32.totalorder %s19, 1
    %p314 = por %p312, %p313
    %p315 = scmp.ne.s32.totalorder %s307, %s310
    %p316 = scmp.eq.s32.totalorder %s19, 0
    %p317 = por %p315, %p316
    %p318 = scmp.ne.s32.totalorder %s307, %s310
    %p319 = scmp.eq.s32.totalorder %s24, 1
    %p320 = por %p318, %p319
    %p321 = scmp.ne.s32.totalorder %s310, %s311
    %p322 = scmp.eq.s32.totalorder %s24, 0
    %p323 = por %p321, %p322
    %p324 = scmp.ne.s32.totalorder %s310, %s311
    %p325 = scmp.eq.s32.totalorder %s25, 1
    %p326 = por %p324, %p325
    %p328 = scmp.ne.s32.totalorder %s311, %s327
    %p329 = scmp.eq.s32.totalorder %s25, 0
    %p330 = por %p328, %p329
    %p331 = scmp.le.s32.totalorder 1, %s19
    %p332 = scmp.lt.s32.totalorder %s19, 3
    %p333 = pnand %p331, %p332
    %p334 = pneg %p333
    // Predicated region
    $region9: #{gpt2_decoder_forward.3} parent=5 // pred_check
      _
    $region10: #{gpt2_decoder_forward.3} parent=5 // pred_check_branch
      %336 = sbr.rel (%p333) target = $region12
    $region11: #{gpt2_decoder_forward.3} parent=5 // pred_region
      %s337 = ssub.s32 %s19, 1
      // Predicated region
      $region13: #{gpt2_decoder_forward.3} parent=11 // pred_check
        %p338 = pneg %p66
      $region14: #{gpt2_decoder_forward.3} parent=11 // pred_check_branch
        %340 = sbr.rel (%p338) target = $region16
      $region15: #{gpt2_decoder_forward.3} parent=11 // pred_region
        _
      $region16: #{gpt2_decoder_forward.3} parent=11 // pred_fallthru
        _
      // Predicated region
      $region17: #{gpt2_decoder_forward.3} parent=11 // pred_check
        %p341 = pneg %p87
      $region18: #{gpt2_decoder_forward.3} parent=11 // pred_check_branch
        %343 = sbr.rel (%p341) target = $region20
      $region19: #{gpt2_decoder_forward.3} parent=11 // pred_region
        _
      $region20: #{gpt2_decoder_forward.3} parent=11 // pred_fallthru
        _
      // Predicated region
      $region21: #{gpt2_decoder_forward.3} parent=11 // pred_check
        %p344 = pneg %p108
      $region22: #{gpt2_decoder_forward.3} parent=11 // pred_check_branch
        %346 = sbr.rel (%p344) target = $region24
      $region23: #{gpt2_decoder_forward.3} parent=11 // pred_region
        _
      $region24: #{gpt2_decoder_forward.3} parent=11 // pred_fallthru
        _
      // Predicated region
      $region25: #{gpt2_decoder_forward.3} parent=11 // pred_check
        %p347 = pneg %p129
      $region26: #{gpt2_decoder_forward.3} parent=11 // pred_check_branch
        %349 = sbr.rel (%p347) target = $region28
      $region27: #{gpt2_decoder_forward.3} parent=11 // pred_region
        _
      $region28: #{gpt2_decoder_forward.3} parent=11 // pred_fallthru
        _
      // Predicated region
      $region29: #{gpt2_decoder_forward.3} parent=11 // pred_check
        %p350 = pneg %p150
      $region30: #{gpt2_decoder_forward.3} parent=11 // pred_check_branch
        %352 = sbr.rel (%p350) target = $region32
      $region31: #{gpt2_decoder_forward.3} parent=11 // pred_region
        _
      $region32: #{gpt2_decoder_forward.3} parent=11 // pred_fallthru
        _
      // Predicated region
      $region33: #{gpt2_decoder_forward.3} parent=11 // pred_check
        %p353 = pneg %p171
      $region34: #{gpt2_decoder_forward.3} parent=11 // pred_check_branch
        %355 = sbr.rel (%p353) target = $region36
      $region35: #{gpt2_decoder_forward.3} parent=11 // pred_region
        _
      $region36: #{gpt2_decoder_forward.3} parent=11 // pred_fallthru
        _
      // Predicated region
      $region37: #{gpt2_decoder_forward.3} parent=11 // pred_check
        %p356 = pneg %p192
      $region38: #{gpt2_decoder_forward.3} parent=11 // pred_check_branch
        %358 = sbr.rel (%p356) target = $region40
      $region39: #{gpt2_decoder_forward.3} parent=11 // pred_region
        _
      $region40: #{gpt2_decoder_forward.3} parent=11 // pred_fallthru
        _
      // Predicated region
      $region41: #{gpt2_decoder_forward.3} parent=11 // pred_check
        %p359 = pneg %p213
      $region42: #{gpt2_decoder_forward.3} parent=11 // pred_check_branch
        %361 = sbr.rel (%p359) target = $region44
      $region43: #{gpt2_decoder_forward.3} parent=11 // pred_region
        _
      $region44: #{gpt2_decoder_forward.3} parent=11 // pred_fallthru
        _
      // Predicated region
      $region45: #{gpt2_decoder_forward.3} parent=11 // pred_check
        %p362 = pneg %p234
      $region46: #{gpt2_decoder_forward.3} parent=11 // pred_check_branch
        %364 = sbr.rel (%p362) target = $region48
      $region47: #{gpt2_decoder_forward.3} parent=11 // pred_region
        _
      $region48: #{gpt2_decoder_forward.3} parent=11 // pred_fallthru
        _
      // Predicated region
      $region49: #{gpt2_decoder_forward.3} parent=11 // pred_check
        %p365 = pneg %p255
      $region50: #{gpt2_decoder_forward.3} parent=11 // pred_check_branch
        %367 = sbr.rel (%p365) target = $region52
      $region51: #{gpt2_decoder_forward.3} parent=11 // pred_region
        _
      $region52: #{gpt2_decoder_forward.3} parent=11 // pred_fallthru
        _
      // Predicated region
      $region53: #{gpt2_decoder_forward.3} parent=11 // pred_check
        %p368 = pneg %p276
      $region54: #{gpt2_decoder_forward.3} parent=11 // pred_check_branch
        %370 = sbr.rel (%p368) target = $region56
      $region55: #{gpt2_decoder_forward.3} parent=11 // pred_region
        _
      $region56: #{gpt2_decoder_forward.3} parent=11 // pred_fallthru
        _
      // Predicated region
      $region57: #{gpt2_decoder_forward.3} parent=11 // pred_check
        %p371 = pneg %p297
      $region58: #{gpt2_decoder_forward.3} parent=11 // pred_check_branch
        %373 = sbr.rel (%p371) target = $region60
      $region59: #{gpt2_decoder_forward.3} parent=11 // pred_region
        _
      $region60: #{gpt2_decoder_forward.3} parent=11 // pred_fallthru
        _
    $region12: #{gpt2_decoder_forward.3} parent=5 // pred_fallthru
      _
    %p374 = scmp.lt.s32.totalorder %s19, 2
    // Predicated region
    $region61: #{gpt2_decoder_forward.3} parent=5 // pred_check
      %p375 = pneg %p374
    $region62: #{gpt2_decoder_forward.3} parent=5 // pred_check_branch
      %377 = sbr.rel (%p375) target = $region64
    $region63: #{gpt2_decoder_forward.3} parent=5 // pred_region
      // Predicated region
      $region65: #{gpt2_decoder_forward.3} parent=63 // pred_check
        %p378 = pneg %p39
      $region66: #{gpt2_decoder_forward.3} parent=63 // pred_check_branch
        %380 = sbr.rel (%p378) target = $region68
      $region67: #{gpt2_decoder_forward.3} parent=63 // pred_region
        %p381 = scmp.lt.s32.totalorder %s19, 1
        %s382 = scalar_select %p381, %s19, 1
        %s383 = smul.addr %s382, 2
        %s384 = smul.addr %s383, 8
        %s385 = scalar_lea.vmem %s0, %s384
      $region68: #{gpt2_decoder_forward.3} parent=63 // pred_fallthru
        _
    $region64: #{gpt2_decoder_forward.3} parent=5 // pred_fallthru
      _
    %p386 = scmp.le.s32.totalorder 1, %s19
    %p387 = scmp.lt.s32.totalorder %s19, 3
    %p388 = pnand %p386, %p387
    %p389 = pneg %p388
    // Predicated region
    $region69: #{gpt2_decoder_forward.3} parent=5 // pred_check
      _
    $region70: #{gpt2_decoder_forward.3} parent=5 // pred_check_branch
      %391 = sbr.rel (%p388) target = $region72
    $region71: #{gpt2_decoder_forward.3} parent=5 // pred_region
      %s392 = ssub.s32 %s19, 1
      %p393 = scmp.lt.s32.totalorder %s24, 1
      %s394 = scalar_select %p393, %s24, 1
      %s395 = smul.addr %s394, 2
      %s396 = smul.addr %s395, 8
      %s397 = scalar_lea.vmem %s0, %s396
      %p398 = pneg %p45
      %p399 = pneg %p42
      %p400 = pneg %p66
      %p401 = pneg %p63
      %p402 = pneg %p87
      %p403 = pneg %p84
      %p404 = pneg %p108
      %p405 = pneg %p105
      %p406 = pneg %p129
      %p407 = pneg %p126
      %p408 = pneg %p150
      %p409 = pneg %p147
      %p410 = pneg %p171
      %p411 = pneg %p168
      %p412 = pneg %p192
      %p413 = pneg %p189
      %p414 = pneg %p213
      %p415 = pneg %p210
      %p416 = pneg %p234
      %p417 = pneg %p231
      %p418 = pneg %p255
      %p419 = pneg %p252
      %p420 = pneg %p276
      %p421 = pneg %p273
      %p422 = pneg %p297
      %p423 = pneg %p294
      %p424 = pneg %p323
      %p425 = pneg %p320
      %p426 = scmp.lt.s32.totalorder %s24, 1
      %s427 = scalar_select %p426, %s24, 1
      %s428 = smul.addr %s427, 2
      %s429 = smul.addr %s428, 8
      %s430 = scalar_lea.vmem %s13, %s429
      %p431 = scmp.lt.s32.totalorder %s24, 1
      %s432 = scalar_select %p431, %s24, 1
      %s433 = smul.addr %s432, 2
      %s434 = smul.addr %s433, 8
      %s435 = scalar_lea.vmem %s0, %s434
      %p436 = scmp.lt.s32.totalorder %s24, 1
      %s437 = scalar_select %p436, %s24, 1
      %s438 = smul.addr %s437, 2
      %s439 = smul.addr %s438, 8
      %s440 = scalar_lea.vmem %s13, %s439
      %v442 = vld [vmem:[%s435] sm:$0xff]
      %v443 = vld [vmem:[%s435 + $0x8] sm:$0xff]
      %v444 = vld [vmem:[%s1] sm:$0x1]
      %v445 = vld [vmem:[%s2] sm:$0x1]
      %vm446 = vcmask 261120
      %v447 = vsel %vm446, %v442, 0.0
      %448 = vadd.xlane.f32.xlu0 %v447
      %v449 = vpop.xlane.xlu0 %448
      %v450 = vsel %vm446, %v443, 0.0
      %451 = vadd.xlane.f32.xlu0 %v450
      %v452 = vpop.xlane.xlu0 %451
      %v453 = vrcp.pop 32.0
      %v454 = vmul.f32 32.0, %v453
      %v455 = vsub.f32 1.0, %v454
      %v456 = vmul.f32 %v453, %v455
      %v457 = vadd.f32 %v453, %v456
      %vm458 = vweird.f32 %v453
      %v459 = vsel %vm458, %v453, %v457
      %v460 = vmul.f32 %v449, %v459
      %v461 = vmul.f32 %v452, %v459
      %v462 = vsub.f32 %v442, %v460
      %v463 = vsub.f32 %v443, %v461
      %v464 = vmul.f32 %v462, %v462
      %v465 = vmul.f32 %v463, %v463
      %v466 = vsel %vm446, %v464, 0.0
      %467 = vadd.xlane.f32.xlu0 %v466
      %v468 = vpop.xlane.xlu0 %467
      %v469 = vsel %vm446, %v465, 0.0
      %470 = vadd.xlane.f32.xlu0 %v469
      %v471 = vpop.xlane.xlu0 %470
      %v472 = vmul.f32 %v468, %v459
      %v473 = vmul.f32 %v471, %v459
      %v474 = vadd.f32 %v472, 1e-05
      %v475 = vadd.f32 %v473, 1e-05
      %v476 = vrsqrt.pop %v474
      %v477 = vmul.f32 %v476, %v474
      %v478 = vmul.f32 %v477, %v476
      %v479 = vmul.f32 0.5, %v478
      %v480 = vsub.f32 1.5, %v479
      %v481 = vmul.f32 %v476, %v480
      %vm482 = vweird.f32 %v474
      %vm483 = vweird.f32 %v476
      %vm484 = vmor %vm482, %vm483
      %v485 = vsel %vm484, %v476, %v481
      %v486 = vrsqrt.pop %v475
      %v487 = vmul.f32 %v486, %v475
      %v488 = vmul.f32 %v487, %v486
      %v489 = vmul.f32 0.5, %v488
      %v490 = vsub.f32 1.5, %v489
      %v491 = vmul.f32 %v486, %v490
      %vm492 = vweird.f32 %v475
      %vm493 = vweird.f32 %v486
      %vm494 = vmor %vm492, %vm493
      %v495 = vsel %vm494, %v486, %v491
      %v496 = vmul.f32 %v462, %v485
      %v497 = vmul.f32 %v463, %v495
      %v499 = vperm.slane %v444, 0
      %v501 = vmul.f32 %v496, %v499
      %v502 = vmul.f32 %v497, %v499
      %v504 = vperm.slane %v445, 0
      %v506 = vadd.f32 %v501, %v504
      %v507 = vadd.f32 %v502, %v504
      %v508 = vpack.c.bf16 %v507, %v506
      %v509 = vld [vmem:[%s3] sm:$0xf]
      %v510 = vld [vmem:[%s3 + $0x4] sm:$0xf]
      %v511 = vld [vmem:[%s3 + $0x8] sm:$0xf]
      %v512 = vld [vmem:[%s3 + $0xc] sm:$0xf]
      %v513 = vld [vmem:[%s4] sm:$0x1]
      %v515 = vperm.slane %v513, 0
      %v521 = vunpack.c.l.b16 %v509
      %v522 = vunpack.c.l.b16 %v510
      %v523 = vunpack.c.l.b16 %v511
      %v524 = vunpack.c.l.b16 %v512
      %v525 = vpack.c.b16 %v522, %v521
      %v526 = vpack.c.b16 %v524, %v523
      %v530 = vsel %vm446, %v508, 0
      %532 = vmatpush.bf16.msra.mxu0 0
      %533 = vmatpush.bf16.msra.mxu0 0
      %534 = vmatpush.bf16.msra.mxu0 0
      %535 = vmatpush.bf16.msra.mxu0 0
      %536 = vmatpush.bf16.msra.mxu0 0
      %537 = vmatpush.bf16.msra.mxu0 0
      %538 = vmatpush.bf16.msra.mxu0 %v526
      %539 = vmatpush.bf16.msra.mxu0 %v525
      %540 = vmatmul.bf16.gmra.mxu0 %v530
      %v541 = vpop.f32.mrf.mxu0
      %v542 = vadd.f32 %v515, %v541
      %v543 = vpop.f32.mrf.mxu0
      %v544 = vadd.f32 %v515, %v543
      %545 = vdwg.mxu0
      %548 = vrot.lane.b32.xlu0 %v542, 112
      %v549 = vpop.permute.xlu0 %548
      %550 = vrot.lane.b32.xlu0 %v544, 112
      %v551 = vpop.permute.xlu0 %550
      %v554 = vpack.c.bf16 %v542, %v542
      %v555 = vpack.c.bf16 %v544, %v544
      %v556 = vpack.c.bf16 %v549, %v549
      %v557 = vpack.c.bf16 %v551, %v551
      %v560 = vunpack.c.l.b16 %v554
      %v561 = vunpack.c.l.b16 %v555
      %v562 = vpack.c.b16 %v561, %v560
      %563 = vrot.lane.b32.xlu0 %v562, 96
      %v564 = vpop.permute.xlu0 %563
      %vm565 = vcmask 130048
      %v567 = vsel %vm565, %v562, 0
      %v570 = vsel %vm565, %v564, 0
      %572 = vmatpush.bf16.xpose.msra.mxu0 0
      %573 = vmatpush.bf16.xpose.msra.mxu0 0
      %574 = vmatpush.bf16.xpose.msra.mxu0 0
      %575 = vmatpush.bf16.xpose.msra.mxu0 0
      %576 = vmatpush.bf16.xpose.msra.mxu0 0
      %577 = vmatpush.bf16.xpose.msra.mxu0 0
      %578 = vmatpush.bf16.xpose.msra.mxu0 0
      %579 = vmatpush.bf16.xpose.msra.mxu0 %v570
      %580 = vmatmul.bf16.gmra.mxu0 %v567
      %v581 = vpop.f32.mrf.mxu0
      %v582 = vadd.f32 0.0, %v581
      %v583 = vpop.f32.mrf.mxu0
      %v584 = vadd.f32 0.0, %v583
      %585 = vdwg.mxu0
      %v588 = vunpack.c.l.b16 %v556
      %v589 = vunpack.c.l.b16 %v557
      %v590 = vpack.c.b16 %v589, %v588
      %591 = vrot.lane.b32.xlu0 %v590, 96
      %v592 = vpop.permute.xlu0 %591
      %v594 = vsel %vm565, %v590, 0
      %v597 = vsel %vm565, %v592, 0
      %599 = vmatpush.bf16.xpose.msra.mxu0 0
      %600 = vmatpush.bf16.xpose.msra.mxu0 0
      %601 = vmatpush.bf16.xpose.msra.mxu0 0
      %602 = vmatpush.bf16.xpose.msra.mxu0 0
      %603 = vmatpush.bf16.xpose.msra.mxu0 0
      %604 = vmatpush.bf16.xpose.msra.mxu0 0
      %605 = vmatpush.bf16.xpose.msra.mxu0 0
      %606 = vmatpush.bf16.xpose.msra.mxu0 %v597
      %607 = vmatmul.bf16.gmra.mxu0 %v594
      %v608 = vpop.f32.mrf.mxu0
      %v609 = vadd.f32 0.0, %v608
      %v610 = vpop.f32.mrf.mxu0
      %v611 = vadd.f32 0.0, %v610
      %612 = vdwg.mxu0
      %v613 = vlaneseq
      %v614 = vshrl.u32 %v613, 7
      %v615 = vadd.s32 %v614, 8
      %v616 = vlaneseq
      %v617 = vand.u32 %v616, 127
      %vm618 = vcmp.ge.s32.totalorder %v614, %v617
      %vm619 = vcmp.ge.s32.totalorder %v615, %v617
      %v620 = vsel %vm618, %v582, -1e+30
      %v621 = vsel %vm619, %v584, -1e+30
      %v622 = vsel %vm618, %v609, -1e+30
      %v623 = vsel %vm619, %v611, -1e+30
      %v624 = vsel %vm565, %v620, -inf
      %625 = vmax.xlane.f32.xlu0 %v624
      %v626 = vpop.xlane.xlu0 %625
      %v627 = vsel %vm565, %v621, -inf
      %628 = vmax.xlane.f32.xlu0 %v627
      %v629 = vpop.xlane.xlu0 %628
      %v630 = vsel %vm565, %v622, -inf
      %631 = vmax.xlane.f32.xlu0 %v630
      %v632 = vpop.xlane.xlu0 %631
      %v633 = vsel %vm565, %v623, -inf
      %634 = vmax.xlane.f32.xlu0 %v633
      %v635 = vpop.xlane.xlu0 %634
      %v636 = vsub.f32 %v620, %v626
      %v637 = vsub.f32 %v621, %v629
      %v638 = vsub.f32 %v622, %v632
      %v639 = vsub.f32 %v623, %v635
      %v640 = vmul.f32 %v636, 1.442695
      %v641 = vpow.pop %v640
      %v642 = vmul.f32 %v637, 1.442695
      %v643 = vpow.pop %v642
      %v644 = vmul.f32 %v638, 1.442695
      %v645 = vpow.pop %v644
      %v646 = vmul.f32 %v639, 1.442695
      %v647 = vpow.pop %v646
      %v648 = vsel %vm565, %v641, 0.0
      %649 = vadd.xlane.f32.xlu0 %v648
      %v650 = vpop.xlane.xlu0 %649
      %v651 = vsel %vm565, %v643, 0.0
      %652 = vadd.xlane.f32.xlu0 %v651
      %v653 = vpop.xlane.xlu0 %652
      %v654 = vsel %vm565, %v645, 0.0
      %655 = vadd.xlane.f32.xlu0 %v654
      %v656 = vpop.xlane.xlu0 %655
      %v657 = vsel %vm565, %v647, 0.0
      %658 = vadd.xlane.f32.xlu0 %v657
      %v659 = vpop.xlane.xlu0 %658
      %v660 = vrcp.pop %v650
      %v661 = vrcp.pop %v653
      %v662 = vrcp.pop %v656
      %v663 = vrcp.pop %v659
      %v664 = vmul.f32 %v641, %v660
      %v665 = vmul.f32 %v643, %v661
      %v666 = vmul.f32 %v645, %v662
      %v667 = vmul.f32 %v647, %v663
      %v668 = vpack.c.bf16 %v664, %v664
      %v669 = vpack.c.bf16 %v665, %v665
      %v670 = vpack.c.bf16 %v666, %v666
      %v671 = vpack.c.bf16 %v667, %v667
      %v674 = vunpack.c.l.b16 %v668
      %v675 = vunpack.c.l.b16 %v669
      %v676 = vpack.c.b16 %v675, %v674
      %677 = vrot.lane.b32.xlu0 %v562, 64
      %v678 = vpop.permute.xlu0 %677
      %v681 = vsel %vm565, %v676, 0
      %683 = vmatpush.bf16.msra.mxu0 0
      %684 = vmatpush.bf16.msra.mxu0 0
      %685 = vmatpush.bf16.msra.mxu0 0
      %686 = vmatpush.bf16.msra.mxu0 0
      %687 = vmatpush.bf16.msra.mxu0 0
      %688 = vmatpush.bf16.msra.mxu0 0
      %689 = vmatpush.bf16.msra.mxu0 0
      %690 = vmatpush.bf16.msra.mxu0 %v678
      %691 = vmatmul.bf16.gmra.mxu0 %v681
      %v692 = vpop.f32.mrf.mxu0
      %v693 = vadd.f32 0.0, %v692
      %v694 = vpop.f32.mrf.mxu0
      %v695 = vadd.f32 0.0, %v694
      %696 = vdwg.mxu0
      %v699 = vunpack.c.l.b16 %v670
      %v700 = vunpack.c.l.b16 %v671
      %v701 = vpack.c.b16 %v700, %v699
      %702 = vrot.lane.b32.xlu0 %v590, 64
      %v703 = vpop.permute.xlu0 %702
      %v706 = vsel %vm565, %v701, 0
      %708 = vmatpush.bf16.msra.mxu0 0
      %709 = vmatpush.bf16.msra.mxu0 0
      %710 = vmatpush.bf16.msra.mxu0 0
      %711 = vmatpush.bf16.msra.mxu0 0
      %712 = vmatpush.bf16.msra.mxu0 0
      %713 = vmatpush.bf16.msra.mxu0 0
      %714 = vmatpush.bf16.msra.mxu0 0
      %715 = vmatpush.bf16.msra.mxu0 %v703
      %716 = vmatmul.bf16.gmra.mxu0 %v706
      %v717 = vpop.f32.mrf.mxu0
      %v718 = vadd.f32 0.0, %v717
      %v719 = vpop.f32.mrf.mxu0
      %v720 = vadd.f32 0.0, %v719
      %721 = vdwg.mxu0
      %v722 = vpack.c.bf16 %v693, %v693
      %v723 = vpack.c.bf16 %v695, %v695
      %v724 = vpack.c.bf16 %v718, %v718
      %v725 = vpack.c.bf16 %v720, %v720
      %v726 = vld [vmem:[%s5] sm:$0xf]
      %v727 = vld [vmem:[%s5 + $0x4] sm:$0xf]
      %v728 = vld [vmem:[%s5 + $0x8] sm:$0xf]
      %v729 = vld [vmem:[%s5 + $0xc] sm:$0xf]
      %v732 = vunpack.c.l.b16 %v722
      %v733 = vunpack.c.l.b16 %v723
      %v734 = vpack.c.b16 %v733, %v732
      %v737 = vunpack.c.l.b16 %v726
      %v738 = vunpack.c.l.b16 %v727
      %v739 = vpack.c.b16 %v738, %v737
      %v742 = vsel %vm565, %v734, 0
      %744 = vmatpush.bf16.msra.mxu0 0
      %745 = vmatpush.bf16.msra.mxu0 0
      %746 = vmatpush.bf16.msra.mxu0 0
      %747 = vmatpush.bf16.msra.mxu0 0
      %748 = vmatpush.bf16.msra.mxu0 0
      %749 = vmatpush.bf16.msra.mxu0 0
      %750 = vmatpush.bf16.msra.mxu0 0
      %751 = vmatpush.bf16.msra.mxu0 %v739
      %752 = vmatmul.bf16.gmra.mxu0 %v742
      %v753 = vpop.f32.mrf.mxu0
      %v754 = vadd.f32 0.0, %v753
      %v755 = vpop.f32.mrf.mxu0
      %v756 = vadd.f32 0.0, %v755
      %757 = vdwg.mxu0
      %v760 = vunpack.c.l.b16 %v724
      %v761 = vunpack.c.l.b16 %v725
      %v762 = vpack.c.b16 %v761, %v760
      %v765 = vunpack.c.l.b16 %v728
      %v766 = vunpack.c.l.b16 %v729
      %v767 = vpack.c.b16 %v766, %v765
      %v770 = vsel %vm565, %v762, 0
      %772 = vmatpush.bf16.msra.mxu0 0
      %773 = vmatpush.bf16.msra.mxu0 0
      %774 = vmatpush.bf16.msra.mxu0 0
      %775 = vmatpush.bf16.msra.mxu0 0
      %776 = vmatpush.bf16.msra.mxu0 0
      %777 = vmatpush.bf16.msra.mxu0 0
      %778 = vmatpush.bf16.msra.mxu0 0
      %779 = vmatpush.bf16.msra.mxu0 %v767
      %780 = vmatmul.bf16.gmra.mxu0 %v770
      %v781 = vpop.f32.mrf.mxu0
      %v782 = vadd.f32 0.0, %v781
      %v783 = vpop.f32.mrf.mxu0
      %v784 = vadd.f32 0.0, %v783
      %785 = vdwg.mxu0
      %v786 = vsel %vm446, %v754, 0.0
      %v787 = vsel %vm446, %v782, 0.0
      %v788 = vadd.f32 %v786, %v787
      %v789 = vsel %vm446, %v756, 0.0
      %v790 = vsel %vm446, %v784, 0.0
      %v791 = vadd.f32 %v789, %v790
      %v792 = vadd.f32 %v442, %v788
      %v793 = vadd.f32 %v443, %v791
      %v794 = vld [vmem:[%s6] sm:$0x1]
      %v796 = vperm.slane %v794, 0
      %v798 = vadd.f32 %v792, %v796
      %v799 = vadd.f32 %v793, %v796
      %v800 = vld [vmem:[%s7] sm:$0x1]
      %v801 = vld [vmem:[%s8] sm:$0x1]
      %v802 = vsel %vm446, %v798, 0.0
      %803 = vadd.xlane.f32.xlu0 %v802
      %v804 = vpop.xlane.xlu0 %803
      %v805 = vsel %vm446, %v799, 0.0
      %806 = vadd.xlane.f32.xlu0 %v805
      %v807 = vpop.xlane.xlu0 %806
      %v808 = vmul.f32 %v804, %v459
      %v809 = vmul.f32 %v807, %v459
      %v810 = vsub.f32 %v798, %v808
      %v811 = vsub.f32 %v799, %v809
      %v812 = vmul.f32 %v810, %v810
      %v813 = vmul.f32 %v811, %v811
      %v814 = vsel %vm446, %v812, 0.0
      %815 = vadd.xlane.f32.xlu0 %v814
      %v816 = vpop.xlane.xlu0 %815
      %v817 = vsel %vm446, %v813, 0.0
      %818 = vadd.xlane.f32.xlu0 %v817
      %v819 = vpop.xlane.xlu0 %818
      %v820 = vmul.f32 %v816, %v459
      %v821 = vmul.f32 %v819, %v459
      %v822 = vadd.f32 %v820, 1e-05
      %v823 = vadd.f32 %v821, 1e-05
      %v824 = vrsqrt.pop %v822
      %v825 = vmul.f32 %v824, %v822
      %v826 = vmul.f32 %v825, %v824
      %v827 = vmul.f32 0.5, %v826
      %v828 = vsub.f32 1.5, %v827
      %v829 = vmul.f32 %v824, %v828
      %vm830 = vweird.f32 %v822
      %vm831 = vweird.f32 %v824
      %vm832 = vmor %vm830, %vm831
      %v833 = vsel %vm832, %v824, %v829
      %v834 = vrsqrt.pop %v823
      %v835 = vmul.f32 %v834, %v823
      %v836 = vmul.f32 %v835, %v834
      %v837 = vmul.f32 0.5, %v836
      %v838 = vsub.f32 1.5, %v837
      %v839 = vmul.f32 %v834, %v838
      %vm840 = vweird.f32 %v823
      %vm841 = vweird.f32 %v834
      %vm842 = vmor %vm840, %vm841
      %v843 = vsel %vm842, %v834, %v839
      %v844 = vmul.f32 %v810, %v833
      %v845 = vmul.f32 %v811, %v843
      %v847 = vperm.slane %v800, 0
      %v849 = vmul.f32 %v844, %v847
      %v850 = vmul.f32 %v845, %v847
      %v852 = vperm.slane %v801, 0
      %v854 = vadd.f32 %v849, %v852
      %v855 = vadd.f32 %v850, %v852
      %v856 = vpack.c.bf16 %v855, %v854
      %v857 = vld [vmem:[%s9] sm:$0xf]
      %v858 = vld [vmem:[%s9 + $0x4] sm:$0xf]
      %v859 = vld [vmem:[%s9 + $0x8] sm:$0xf]
      %v860 = vld [vmem:[%s9 + $0xc] sm:$0xf]
      %v861 = vld [vmem:[%s10] sm:$0x1]
      %v863 = vperm.slane %v861, 0
      %v869 = vunpack.c.l.b16 %v857
      %v870 = vunpack.c.l.b16 %v858
      %v871 = vunpack.c.l.b16 %v859
      %v872 = vunpack.c.l.b16 %v860
      %v873 = vpack.c.b16 %v870, %v869
      %v874 = vpack.c.b16 %v872, %v871
      %v878 = vsel %vm446, %v856, 0
      %880 = vmatpush.bf16.msra.mxu0 0
      %881 = vmatpush.bf16.msra.mxu0 0
      %882 = vmatpush.bf16.msra.mxu0 0
      %883 = vmatpush.bf16.msra.mxu0 0
      %884 = vmatpush.bf16.msra.mxu0 0
      %885 = vmatpush.bf16.msra.mxu0 0
      %886 = vmatpush.bf16.msra.mxu0 %v874
      %887 = vmatpush.bf16.msra.mxu0 %v873
      %888 = vmatmul.bf16.gmra.mxu0 %v878
      %v889 = vpop.f32.mrf.mxu0
      %v890 = vadd.f32 %v863, %v889
      %v891 = vpop.f32.mrf.mxu0
      %v892 = vadd.f32 %v863, %v891
      %893 = vdwg.mxu0
      %v894 = vmul.f32 %v890, 0.5
      %v895 = vmul.f32 %v892, 0.5
      %v896 = vmul.f32 %v890, 0.044715
      %v897 = vmul.f32 %v892, 0.044715
      %v898 = vmul.f32 %v896, %v890
      %v899 = vmul.f32 %v897, %v892
      %v900 = vmul.f32 %v898, %v890
      %v901 = vmul.f32 %v899, %v892
      %v902 = vadd.f32 %v890, %v900
      %v903 = vadd.f32 %v892, %v901
      %v904 = vmul.f32 %v902, 0.7978846
      %v905 = vmul.f32 %v903, 0.7978846
      %v906 = vtanh.pop %v904
      %v907 = vtanh.pop %v905
      %v908 = vadd.f32 %v906, 1.0
      %v909 = vadd.f32 %v907, 1.0
      %v910 = vmul.f32 %v894, %v908
      %v911 = vmul.f32 %v895, %v909
      %v912 = vpack.c.bf16 %v911, %v910
      %v913 = vld [vmem:[%s11] sm:$0xf]
      %v914 = vld [vmem:[%s11 + $0x4] sm:$0xf]
      %v915 = vld [vmem:[%s11 + $0x8] sm:$0xf]
      %v916 = vld [vmem:[%s11 + $0xc] sm:$0xf]
      %v917 = vld [vmem:[%s11 + $0x10] sm:$0xf]
      %v918 = vld [vmem:[%s11 + $0x14] sm:$0xf]
      %v919 = vld [vmem:[%s11 + $0x18] sm:$0xf]
      %v920 = vld [vmem:[%s11 + $0x1c] sm:$0xf]
      %v921 = vld [vmem:[%s11 + $0x20] sm:$0xf]
      %v922 = vld [vmem:[%s11 + $0x24] sm:$0xf]
      %v923 = vld [vmem:[%s11 + $0x28] sm:$0xf]
      %v924 = vld [vmem:[%s11 + $0x2c] sm:$0xf]
      %v925 = vld [vmem:[%s11 + $0x30] sm:$0xf]
      %v926 = vld [vmem:[%s11 + $0x34] sm:$0xf]
      %v927 = vld [vmem:[%s11 + $0x38] sm:$0xf]
      %v928 = vld [vmem:[%s11 + $0x3c] sm:$0xf]
      %v929 = vld [vmem:[%s12] sm:$0x1]
      %v931 = vperm.slane %v929, 0
      %v949 = vunpack.c.l.b16 %v913
      %v950 = vunpack.c.l.b16 %v914
      %v951 = vunpack.c.l.b16 %v915
      %v952 = vunpack.c.l.b16 %v916
      %v953 = vunpack.c.l.b16 %v917
      %v954 = vunpack.c.l.b16 %v918
      %v955 = vunpack.c.l.b16 %v919
      %v956 = vunpack.c.l.b16 %v920
      %v957 = vunpack.c.l.b16 %v921
      %v958 = vunpack.c.l.b16 %v922
      %v959 = vunpack.c.l.b16 %v923
      %v960 = vunpack.c.l.b16 %v924
      %v961 = vunpack.c.l.b16 %v925
      %v962 = vunpack.c.l.b16 %v926
      %v963 = vunpack.c.l.b16 %v927
      %v964 = vunpack.c.l.b16 %v928
      %v965 = vpack.c.b16 %v950, %v949
      %v966 = vpack.c.b16 %v952, %v951
      %v967 = vpack.c.b16 %v954, %v953
      %v968 = vpack.c.b16 %v956, %v955
      %v969 = vpack.c.b16 %v958, %v957
      %v970 = vpack.c.b16 %v960, %v959
      %v971 = vpack.c.b16 %v962, %v961
      %v972 = vpack.c.b16 %v964, %v963
      %981 = vmatpush.bf16.msra.mxu0 %v972
      %982 = vmatpush.bf16.msra.mxu0 %v971
      %983 = vmatpush.bf16.msra.mxu0 %v970
      %984 = vmatpush.bf16.msra.mxu0 %v969
      %985 = vmatpush.bf16.msra.mxu0 %v968
      %986 = vmatpush.bf16.msra.mxu0 %v967
      %987 = vmatpush.bf16.msra.mxu0 %v966
      %988 = vmatpush.bf16.msra.mxu0 %v965
      %989 = vmatmul.bf16.gmra.mxu0 %v912
      %v990 = vpop.f32.mrf.mxu0
      %v991 = vadd.f32 %v931, %v990
      %v992 = vpop.f32.mrf.mxu0
      %v993 = vadd.f32 %v931, %v992
      %994 = vdwg.mxu0
      %v995 = vadd.f32 %v798, %v991
      %v996 = vadd.f32 %v799, %v993
      %997 = vst.msk [vmem:[%s440] sm:$0xff] %vm446, %v995
      %998 = vst.msk [vmem:[%s440 + $0x8] sm:$0xff] %vm446, %v996
      %p999 = scmp.lt.s32.totalorder %s24, 1
      %s1000 = scalar_select %p999, %s24, 1
      %s1001 = smul.addr %s1000, 2
      %s1002 = smul.addr %s1001, 8
      %s1003 = scalar_lea.vmem %s13, %s1002
      // Predicated region
      $region73: #{gpt2_decoder_forward.3} parent=71 // pred_check
        %p1004 = pneg %p320
      $region74: #{gpt2_decoder_forward.3} parent=71 // pred_check_branch
        %1006 = sbr.rel (%p1004) target = $region76
      $region75: #{gpt2_decoder_forward.3} parent=71 // pred_region
        _
      $region76: #{gpt2_decoder_forward.3} parent=71 // pred_fallthru
        _
    $region72: #{gpt2_decoder_forward.3} parent=5 // pred_fallthru
      _
    %p1007 = scmp.le.s32.totalorder 2, %s19
    // Predicated region
    $region77: #{gpt2_decoder_forward.3} parent=5 // pred_check
      %p1008 = pneg %p1007
    $region78: #{gpt2_decoder_forward.3} parent=5 // pred_check_branch
      %1010 = sbr.rel (%p1008) target = $region80
    $region79: #{gpt2_decoder_forward.3} parent=5 // pred_region
      %s1011 = ssub.s32 %s19, 2
      // Predicated region
      $region81: #{gpt2_decoder_forward.3} parent=79 // pred_check
        %p1012 = pneg %p326
      $region82: #{gpt2_decoder_forward.3} parent=79 // pred_check_branch
        %1014 = sbr.rel (%p1012) target = $region84
      $region83: #{gpt2_decoder_forward.3} parent=79 // pred_region
        %p1015 = scmp.lt.s32.totalorder %s25, 1
        %s1016 = scalar_select %p1015, %s25, 1
        %s1017 = smul.addr %s1016, 2
        %s1018 = smul.addr %s1017, 8
        %s1019 = scalar_lea.vmem %s13, %s1018
      $region84: #{gpt2_decoder_forward.3} parent=79 // pred_fallthru
        _
    $region80: #{gpt2_decoder_forward.3} parent=5 // pred_fallthru
      _
  $region6: #{gpt2_decoder_forward.3} parent=0 // loop_footer
    %s23 = sadd.s32 1, %s19
  $region7: #{gpt2_decoder_forward.3} parent=0 // loop_footer_branch
    %18 = sbr.rel target = $region3
  $region8: #{gpt2_decoder_forward.3} parent=0 // loop_exit
    _

</llo_original>
